<compile_context>
chip_gen: v5e
topology: v5e:2x2
jax: 0.10.0
libtpu: 0.0.40
codegen_flags: <defaults>
</compile_context>

<pallas_src>
import jax
import jax.numpy as jnp
from jax import lax
from jax.experimental import pallas as pl
from jax.experimental.pallas import tpu as pltpu


def _pad_to(n, m):
    return ((n + m - 1) // m) * m


# ----------------------------------------------------------------------------
# Kernel
# ----------------------------------------------------------------------------
def _make_kernel(num_layers, field_dims, vocab, compute_dtype):
    num_fields = len(field_dims)
    # Static per-field offsets into the shared vocab (python ints).
    offsets = [0]
    for fd in field_dims[:-1]:
        offsets.append(offsets[-1] + int(fd))

    def kernel(*refs):
        x_ref = refs[0]                                   # (TB, F) int32
        w_refs = refs[1:1 + num_layers]                   # fused layer weights
        b_refs = refs[1 + num_layers:1 + 2 * num_layers]  # fused biases (1, P_l)
        hv_ref = refs[1 + 2 * num_layers]                 # (1, P_last) head vec
        bh_ref = refs[2 + 2 * num_layers]                 # (1, 1) head bias
        o_ref = refs[3 + 2 * num_layers]                  # (1, TB) lane-dense out

        tb = x_ref.shape[0]
        ncols = num_fields * vocab

        # ---- fused embedding gather: build the multi-hot matrix ------------
        xv = x_ref[...]                                       # (TB, F) int32
        col_iota = lax.broadcasted_iota(jnp.int32, (tb, ncols), 1)
        oh = (col_iota == (xv[:, 0:1] + offsets[0])).astype(jnp.float32)
        for f in range(1, num_fields):
            gcol = xv[:, f:f + 1] + (offsets[f] + f * vocab)  # (TB, 1)
            oh = oh + (col_iota == gcol).astype(jnp.float32)

        # ---- fused MLP towers: one wide MXU matmul per layer ----------------
        h = oh                                                # f32
        for l in range(num_layers):
            z = jnp.dot(h.astype(compute_dtype), w_refs[l][...],
                        preferred_element_type=jnp.float32)
            h = jnp.maximum(z + b_refs[l][...], 0.0)          # bias+ReLU in f32

        # ---- head: mean folded into hv; transposed-RHS matmul -> (1, TB) ----
        z = lax.dot_general(hv_ref[...], h, (((1,), (1,)), ((), ())),
                            preferred_element_type=jnp.float32)
        o_ref[...] = jax.nn.sigmoid(z + bh_ref[...])

    return kernel


# ----------------------------------------------------------------------------
# Wrapper
# ----------------------------------------------------------------------------
def mwd_forward(x_idx, params, *, batch_tile=256, compute_dtype=jnp.float32):
    """x_idx: (B, num_fields) int32 categorical indices.  Returns (B,) f32."""
    field_dims, vocab, ws, bs, hv, bh = params
    B, F = x_idx.shape
    assert F == len(field_dims)
    assert batch_tile % 128 == 0, "batch_tile must be a multiple of 128"
    num_layers = len(ws)

    # Pad the batch to a multiple of batch_tile (index 0 is always valid).
    B_pad = _pad_to(max(B, 1), batch_tile)
    if B_pad != B:
        x_idx = jnp.pad(x_idx, ((0, B_pad - B), (0, 0)))
    grid = (B_pad // batch_tile,)

    # Optional bf16 MXU inputs (v6e/v7x); biases / head stay f32.
    ws = [w.astype(compute_dtype) for w in ws]

    def full_block(arr):
        nd = arr.ndim
        return pl.BlockSpec(arr.shape, lambda i, _nd=nd: (0,) * _nd)

    in_specs = [pl.BlockSpec((batch_tile, F), lambda i: (i, 0))]
    in_specs += [full_block(w) for w in ws]
    in_specs += [full_block(b) for b in bs]
    in_specs += [full_block(hv), full_block(bh)]

    # Lane-dense output: one row of B_pad lanes, each grid step writes a
    # (1, batch_tile) column block with unmasked stores.
    out_specs = pl.BlockSpec((1, batch_tile), lambda i: (0, i))
    out_shape = jax.ShapeDtypeStruct((1, B_pad), jnp.float32)

    out = pl.pallas_call(
        _make_kernel(num_layers, field_dims, vocab, compute_dtype),
        out_shape=out_shape,
        grid_spec=pltpu.PrefetchScalarGridSpec(
            num_scalar_prefetch=0,
            grid=grid,
            in_specs=in_specs,
            out_specs=out_specs,
        ),
        compiler_params=pltpu.CompilerParams(
            dimension_semantics=("parallel",)),
    )(x_idx, *ws, *bs, hv, bh)
    return out[0, :B]


# ----------------------------------------------------------------------------
# Parameter construction / host-side fusion
# ----------------------------------------------------------------------------
def init_raw_params(key, field_dims, embed_dim, num_mlps, mlp_dims):
    """Synthetic torch-like parameters with eval-mode BN folded into each Linear.

    Returns (emb_table (V,E), layers[l][m] = (W_eff (in,out), b_eff (out,)),
             wh (H_last,1), bh (1,1)).
    """
    eps = 1e-5
    vocab = sum(field_dims)
    d_in = len(field_dims) * embed_dim
    dims = [d_in] + list(mlp_dims)

    k_emb, k_mlp, k_head = jax.random.split(key, 3)
    emb_table = 0.1 * jax.random.normal(k_emb, (vocab, embed_dim), jnp.float32)

    layers = []
    for l in range(len(mlp_dims)):
        fan_in, fan_out = dims[l], dims[l + 1]
        per_tower = []
        for m in range(num_mlps):
            kk = jax.random.fold_in(k_mlp, l * 1000 + m)
            k1, k2, k3, k4, k5, k6 = jax.random.split(kk, 6)
            W = jax.random.normal(k1, (fan_out, fan_in), jnp.float32) / jnp.sqrt(fan_in)
            b = 0.01 * jax.random.normal(k2, (fan_out,), jnp.float32)
            gamma = 1.0 + 0.05 * jax.random.normal(k3, (fan_out,), jnp.float32)
            beta = 0.05 * jax.random.normal(k4, (fan_out,), jnp.float32)
            rmean = 0.05 * jax.random.normal(k5, (fan_out,), jnp.float32)
            rvar = 1.0 + 0.1 * jax.nn.softplus(jax.random.normal(k6, (fan_out,)))
            s = gamma / jnp.sqrt(rvar + eps)
            W_eff = (W * s[:, None]).T              # (fan_in, fan_out)
            b_eff = (b - rmean) * s + beta          # (fan_out,)
            per_tower.append((W_eff, b_eff))
        layers.append(per_tower)

    kh1, kh2 = jax.random.split(k_head)
    wh = (jax.random.normal(kh1, (1, mlp_dims[-1]), jnp.float32)
          / jnp.sqrt(mlp_dims[-1])).T               # (H_last, 1)
    bh = 0.01 * jax.random.normal(kh2, (1, 1), jnp.float32)
    return emb_table, layers, wh, bh


def pack_params(field_dims, embed_dim, emb_table, layers, wh, bh):
    """Host-side fusion for the kernel:
      * fold the shared embedding table into the layer-0 weight (multi-hot matmul),
      * concat towers (layer 0) / block-diagonalize towers (deeper layers),
      * zero-pad lane dims to multiples of 128 (padded lanes stay 0 through ReLU),
      * fold the 1/num_mlps mean into the head vector.
    """
    num_fields = len(field_dims)
    vocab = sum(field_dims)
    num_layers = len(layers)
    num_mlps = len(layers[0])

    ws, bs = [], []
    for l in range(num_layers):
        fan_in = layers[l][0][0].shape[0]
        fan_out = layers[l][0][0].shape[1]
        p_out = _pad_to(num_mlps * fan_out, 128)

        b_wide = jnp.zeros((1, p_out), jnp.float32)
        for m in range(num_mlps):
            b_wide = b_wide.at[0, m * fan_out:(m + 1) * fan_out].set(layers[l][m][1])

        if l == 0:
            # Fold the embedding table: input to the kernel is the multi-hot
            # (F*V) matrix, so W0_fold[f*V + v, :] = emb_table[v] @ W0[f-th E block].
            w = jnp.zeros((num_fields * vocab, p_out), jnp.float32)
            for m in range(num_mlps):
                W0 = layers[l][m][0]                              # (F*E, fan_out)
                for f in range(num_fields):
                    blk = emb_table @ W0[f * embed_dim:(f + 1) * embed_dim, :]
                    w = w.at[f * vocab:(f + 1) * vocab,
                             m * fan_out:(m + 1) * fan_out].set(blk)
        else:
            p_in = _pad_to(num_mlps * fan_in, 128)
            w = jnp.zeros((p_in, p_out), jnp.float32)             # block-diagonal
            for m in range(num_mlps):
                w = w.at[m * fan_in:(m + 1) * fan_in,
                         m * fan_out:(m + 1) * fan_out].set(layers[l][m][0])
        ws.append(w)
        bs.append(b_wide)

    h_last = wh.shape[0]
    p_last = _pad_to(num_mlps * h_last, 128)
    hv = jnp.zeros((1, p_last), jnp.float32)
    for m in range(num_mlps):
        hv = hv.at[0, m * h_last:(m + 1) * h_last].set(wh[:, 0] / num_mlps)
    return (tuple(int(d) for d in field_dims), vocab, ws, bs, hv,
            jnp.asarray(bh, jnp.float32))


# ----------------------------------------------------------------------------
# Pure-JAX reference (mirrors the torch forward: gather -> towers -> mean -> head)
# ----------------------------------------------------------------------------
def reference(x_idx, field_dims, embed_dim, emb_table, layers, wh, bh):
    offsets = jnp.array([0] + list(jnp.cumsum(jnp.array(field_dims))[:-1]), jnp.int32)
    idx = x_idx + offsets[None, :]
    embed_x = jnp.take(emb_table, idx, axis=0).reshape(x_idx.shape[0], -1)
    feats = []
    for m in range(len(layers[0])):
        h = embed_x
        for l in range(len(layers)):
            W, b = layers[l][m]
            h = jnp.maximum(h @ W + b[None, :], 0.0)
        feats.append(h)
    feat = jnp.mean(jnp.stack(feats, axis=-1), axis=-1)
    return jax.nn.sigmoid(feat @ wh + bh)[:, 0]


if __name__ == "__main__":
    field_dims = (7, 11, 13, 17)     # num_fields = 4, shared vocab = 48
    embed_dim = 16                   # embed_output_dim = 64
    num_mlps = 3
    mlp_dims = (32, 32)
    batch = 500                      # not a multiple of batch_tile -> exercises padding

    key = jax.random.PRNGKey(0)
    k_param, k_x = jax.random.split(key)
    emb_table, layers, wh, bh = init_raw_params(
        k_param, field_dims, embed_dim, num_mlps, mlp_dims)
    params = pack_params(field_dims, embed_dim, emb_table, layers, wh, bh)

    # x: (batch, num_fields) int32 categorical indices, each within its field.
    cols = []
    for f, fd in enumerate(field_dims):
        cols.append(jax.random.randint(jax.random.fold_in(k_x, f), (batch,), 0, fd))
    x = jnp.stack(cols, axis=1).astype(jnp.int32)

    # compute_dtype=jnp.bfloat16 is a further option on v6e/v7x; f32 kept here
    # so the 1e-3 check against the f32 reference is comfortable on all chips.
    out = mwd_forward(x, params, batch_tile=256, compute_dtype=jnp.float32)
    out = jax.block_until_ready(out)

    ref = reference(x, field_dims, embed_dim, emb_table, layers, wh, bh)
    assert out.shape == (batch,)
    assert jnp.allclose(out, ref, atol=1e-3, rtol=1e-3), (
        float(jnp.max(jnp.abs(out - ref))))
    print("KERNEL_OK")
</pallas_src>

<mosaic_0001>
module attributes {stable_mosaic.version = 11 : i64} {
  func.func @kernel(%arg0: i32, %arg1: memref<256x4xi32, #tpu.memory_space<vmem>>, %arg2: memref<192x128xf32, #tpu.memory_space<vmem>>, %arg3: memref<128x128xf32, #tpu.memory_space<vmem>>, %arg4: memref<1x128xf32, #tpu.memory_space<vmem>>, %arg5: memref<1x128xf32, #tpu.memory_space<vmem>>, %arg6: memref<1x128xf32, #tpu.memory_space<vmem>>, %arg7: memref<1x1xf32, #tpu.memory_space<vmem>>, %arg8: memref<1x256xf32, #tpu.memory_space<vmem>>) attributes {dimension_semantics = [#tpu.dimension_semantics<parallel>], iteration_bounds = array<i64: 2>, scalar_prefetch = 0 : i64, scratch_operands = 0 : i64, tpu.core_type = #tpu.core_type<tc>, window_params = [{transform_indices = @transform_0, window_bounds = array<i64: 256, 4>}, {pipeline_mode = #tpu.pipeline_mode<synchronous>, transform_indices = @transform_1, window_bounds = array<i64: 192, 128>}, {pipeline_mode = #tpu.pipeline_mode<synchronous>, transform_indices = @transform_2, window_bounds = array<i64: 128, 128>}, {pipeline_mode = #tpu.pipeline_mode<synchronous>, transform_indices = @transform_3, window_bounds = array<i64: 1, 128>}, {pipeline_mode = #tpu.pipeline_mode<synchronous>, transform_indices = @transform_4, window_bounds = array<i64: 1, 128>}, {pipeline_mode = #tpu.pipeline_mode<synchronous>, transform_indices = @transform_5, window_bounds = array<i64: 1, 128>}, {pipeline_mode = #tpu.pipeline_mode<synchronous>, transform_indices = @transform_6, window_bounds = array<i64: 1, 1>}, {transform_indices = @transform_7, window_bounds = array<i64: 1, 256>}]} {
    %c0 = arith.constant 0 : index
    %c0_0 = arith.constant 0 : index
    %0 = vector.load %arg1[%c0, %c0_0] : memref<256x4xi32, #tpu.memory_space<vmem>>, vector<256x4xi32>
    %1 = tpu.iota {dimensions = array<i32: 1>} : vector<256x192xi32>
    %2 = vector.extract_strided_slice %0 {offsets = [0, 0], sizes = [256, 1], strides = [1, 1]} : vector<256x4xi32> to vector<256x1xi32>
    %c0_i32 = arith.constant 0 : i32
    %3 = vector.broadcast %c0_i32 : i32 to vector<256x1xi32>
    %4 = arith.addi %2, %3 : vector<256x1xi32>
    %5 = vector.broadcast %4 : vector<256x1xi32> to vector<256x192xi32>
    %6 = arith.cmpi eq, %1, %5 : vector<256x192xi32>
    %7 = arith.extui %6 : vector<256x192xi1> to vector<256x192xi32>
    %8 = arith.sitofp %7 : vector<256x192xi32> to vector<256x192xf32>
    %9 = vector.extract_strided_slice %0 {offsets = [0, 1], sizes = [256, 1], strides = [1, 1]} : vector<256x4xi32> to vector<256x1xi32>
    %c55_i32 = arith.constant 55 : i32
    %10 = vector.broadcast %c55_i32 : i32 to vector<256x1xi32>
    %11 = arith.addi %9, %10 : vector<256x1xi32>
    %12 = vector.broadcast %11 : vector<256x1xi32> to vector<256x192xi32>
    %13 = arith.cmpi eq, %1, %12 : vector<256x192xi32>
    %14 = arith.extui %13 : vector<256x192xi1> to vector<256x192xi32>
    %15 = arith.sitofp %14 : vector<256x192xi32> to vector<256x192xf32>
    %16 = arith.addf %8, %15 : vector<256x192xf32>
    %17 = vector.extract_strided_slice %0 {offsets = [0, 2], sizes = [256, 1], strides = [1, 1]} : vector<256x4xi32> to vector<256x1xi32>
    %c114_i32 = arith.constant 114 : i32
    %18 = vector.broadcast %c114_i32 : i32 to vector<256x1xi32>
    %19 = arith.addi %17, %18 : vector<256x1xi32>
    %20 = vector.broadcast %19 : vector<256x1xi32> to vector<256x192xi32>
    %21 = arith.cmpi eq, %1, %20 : vector<256x192xi32>
    %22 = arith.extui %21 : vector<256x192xi1> to vector<256x192xi32>
    %23 = arith.sitofp %22 : vector<256x192xi32> to vector<256x192xf32>
    %24 = arith.addf %16, %23 : vector<256x192xf32>
    %25 = vector.extract_strided_slice %0 {offsets = [0, 3], sizes = [256, 1], strides = [1, 1]} : vector<256x4xi32> to vector<256x1xi32>
    %c175_i32 = arith.constant 175 : i32
    %26 = vector.broadcast %c175_i32 : i32 to vector<256x1xi32>
    %27 = arith.addi %25, %26 : vector<256x1xi32>
    %28 = vector.broadcast %27 : vector<256x1xi32> to vector<256x192xi32>
    %29 = arith.cmpi eq, %1, %28 : vector<256x192xi32>
    %30 = arith.extui %29 : vector<256x192xi1> to vector<256x192xi32>
    %31 = arith.sitofp %30 : vector<256x192xi32> to vector<256x192xf32>
    %32 = arith.addf %24, %31 : vector<256x192xf32>
    %c0_1 = arith.constant 0 : index
    %c0_2 = arith.constant 0 : index
    %33 = vector.load %arg2[%c0_1, %c0_2] : memref<192x128xf32, #tpu.memory_space<vmem>>, vector<192x128xf32>
    %cst = arith.constant dense<0.000000e+00> : vector<256x128xf32>
    %34 = tpu.matmul %32, %33, %cst {dimension_numbers = #tpu.dot_dimension_numbers<[1], [0], [0], [1], [0, 0, 1, 1], [], []>} : vector<256x192xf32>, vector<192x128xf32>, vector<256x128xf32> -> vector<256x128xf32>
    %c0_3 = arith.constant 0 : index
    %c0_4 = arith.constant 0 : index
    %35 = vector.load %arg4[%c0_3, %c0_4] : memref<1x128xf32, #tpu.memory_space<vmem>>, vector<1x128xf32>
    %36 = vector.broadcast %35 : vector<1x128xf32> to vector<256x128xf32>
    %37 = arith.addf %34, %36 : vector<256x128xf32>
    %cst_5 = arith.constant 0.000000e+00 : f32
    %38 = vector.broadcast %cst_5 : f32 to vector<256x128xf32>
    %39 = arith.maximumf %37, %38 : vector<256x128xf32>
    %c0_6 = arith.constant 0 : index
    %c0_7 = arith.constant 0 : index
    %40 = vector.load %arg3[%c0_6, %c0_7] : memref<128x128xf32, #tpu.memory_space<vmem>>, vector<128x128xf32>
    %cst_8 = arith.constant dense<0.000000e+00> : vector<256x128xf32>
    %41 = tpu.matmul %39, %40, %cst_8 {dimension_numbers = #tpu.dot_dimension_numbers<[1], [0], [0], [1], [0, 0, 1, 1], [], []>} : vector<256x128xf32>, vector<128x128xf32>, vector<256x128xf32> -> vector<256x128xf32>
    %c0_9 = arith.constant 0 : index
    %c0_10 = arith.constant 0 : index
    %42 = vector.load %arg5[%c0_9, %c0_10] : memref<1x128xf32, #tpu.memory_space<vmem>>, vector<1x128xf32>
    %43 = vector.broadcast %42 : vector<1x128xf32> to vector<256x128xf32>
    %44 = arith.addf %41, %43 : vector<256x128xf32>
    %cst_11 = arith.constant 0.000000e+00 : f32
    %45 = vector.broadcast %cst_11 : f32 to vector<256x128xf32>
    %46 = arith.maximumf %44, %45 : vector<256x128xf32>
    %c0_12 = arith.constant 0 : index
    %c0_13 = arith.constant 0 : index
    %47 = vector.load %arg6[%c0_12, %c0_13] : memref<1x128xf32, #tpu.memory_space<vmem>>, vector<1x128xf32>
    %cst_14 = arith.constant dense<0.000000e+00> : vector<1x256xf32>
    %48 = tpu.matmul %47, %46, %cst_14 {dimension_numbers = #tpu.dot_dimension_numbers<[1], [1], [0], [0], [0, 0, 1, 0], [], []>} : vector<1x128xf32>, vector<256x128xf32>, vector<1x256xf32> -> vector<1x256xf32>
    %c0_15 = arith.constant 0 : index
    %c0_16 = arith.constant 0 : index
    %49 = vector.load %arg7[%c0_15, %c0_16] : memref<1x1xf32, #tpu.memory_space<vmem>>, vector<1x1xf32>
    %50 = vector.broadcast %49 : vector<1x1xf32> to vector<1x256xf32>
    %51 = arith.addf %48, %50 : vector<1x256xf32>
    %52 = arith.negf %51 : vector<1x256xf32>
    %53 = math.exp %52 : vector<1x256xf32>
    %cst_17 = arith.constant 1.000000e+00 : f32
    %54 = vector.broadcast %cst_17 : f32 to vector<1x256xf32>
    %55 = arith.addf %54, %53 : vector<1x256xf32>
    %56 = arith.divf %54, %55 : vector<1x256xf32>
    %c0_18 = arith.constant 0 : index
    %c0_19 = arith.constant 0 : index
    %57 = vector.load %arg8[%c0_18, %c0_19] : memref<1x256xf32, #tpu.memory_space<vmem>>, vector<1x256xf32>
    tpu.vector_store %arg8[%c0_18, %c0_19], %56 {strides = array<i32>} : memref<1x256xf32, #tpu.memory_space<vmem>>, vector<1x256xf32>,
    return
  }
  func.func @transform_0(%arg0: i32) -> (i32, i32) {
    %c0_i32 = arith.constant 0 : i32
    %c0_i32_0 = arith.constant 0 : i32
    return %arg0, %c0_i32 : i32, i32
  }
  func.func @transform_1(%arg0: i32) -> (i32, i32) {
    %c0_i32 = arith.constant 0 : i32
    %c0_i32_0 = arith.constant 0 : i32
    %c0_i32_1 = arith.constant 0 : i32
    return %c0_i32, %c0_i32_0 : i32, i32
  }
  func.func @transform_2(%arg0: i32) -> (i32, i32) {
    %c0_i32 = arith.constant 0 : i32
    %c0_i32_0 = arith.constant 0 : i32
    %c0_i32_1 = arith.constant 0 : i32
    return %c0_i32, %c0_i32_0 : i32, i32
  }
  func.func @transform_3(%arg0: i32) -> (i32, i32) {
    %c0_i32 = arith.constant 0 : i32
    %c0_i32_0 = arith.constant 0 : i32
    %c0_i32_1 = arith.constant 0 : i32
    return %c0_i32, %c0_i32_0 : i32, i32
  }
  func.func @transform_4(%arg0: i32) -> (i32, i32) {
    %c0_i32 = arith.constant 0 : i32
    %c0_i32_0 = arith.constant 0 : i32
    %c0_i32_1 = arith.constant 0 : i32
    return %c0_i32, %c0_i32_0 : i32, i32
  }
  func.func @transform_5(%arg0: i32) -> (i32, i32) {
    %c0_i32 = arith.constant 0 : i32
    %c0_i32_0 = arith.constant 0 : i32
    %c0_i32_1 = arith.constant 0 : i32
    return %c0_i32, %c0_i32_0 : i32, i32
  }
  func.func @transform_6(%arg0: i32) -> (i32, i32) {
    %c0_i32 = arith.constant 0 : i32
    %c0_i32_0 = arith.constant 0 : i32
    %c0_i32_1 = arith.constant 0 : i32
    return %c0_i32, %c0_i32_0 : i32, i32
  }
  func.func @transform_7(%arg0: i32) -> (i32, i32) {
    %c0_i32 = arith.constant 0 : i32
    %c0_i32_0 = arith.constant 0 : i32
    return %c0_i32, %arg0 : i32, i32
  }
}

</mosaic_0001>

<llo_original>
// kernel: tpu_custom_call.1
$region0: #{tpu_custom_call.1}
  #allocation0 [shape = 'u32[]', space=smem, size = 0x4, offset = 0x4, fixed_abs, tag = 'smem constant byte address 0x4 - core index']
  #allocation1 [shape = 'u32[72,128]{1,0:T(1,128)}', space=vmem, size = 0x9000, scoped, tag = 'internal scratch']
  #allocation2 [shape = 'f32[1,1]{1,0:T(1,128)S(1)}', space=vmem, size = 0x200, scoped, tag = 'scoped memory for tpu_custom_call.1']
  %s0 = inlined_call_operand.vmem [shape: s32[512,4], index: 0, kind: input, shape index: {}]
  %s1 = inlined_call_operand.vmem [shape: f32[192,128], index: 1, kind: input, shape index: {}]
  %s2 = inlined_call_operand.vmem [shape: f32[128,128], index: 2, kind: input, shape index: {}]
  %s3 = inlined_call_operand.vmem [shape: f32[1,128], index: 3, kind: input, shape index: {}]
  %s4 = inlined_call_operand.vmem [shape: f32[1,128], index: 4, kind: input, shape index: {}]
  %s5 = inlined_call_operand.vmem [shape: f32[1,128], index: 5, kind: input, shape index: {}]
  %s6 = inlined_call_operand.<no memory space> [shape: f32[1,1], index: 6, kind: input, shape index: {}]
  %s7 = inlined_call_operand.hbm [shape: f32[1,512], index: 7, kind: output, shape index: {}]
  %s8 = sld [smem:[#allocation0]]
  $region61: #{tpu_custom_call.1} parent=0
    _
  %s10 = ssub.s32 1, %s8
  %s11 = scalar_select 0, %s10, %s8
  %v12 = vstv %s6
  %13 = vst [vmem:[#allocation2] sm:$0x1] %v12
  $region1: #{tpu_custom_call.1} parent=0
    #allocation3 [shape = 'u8[2048]{0}', space=vmem, size = 0x800, scoped, tag = 'output window, operand 0']
    #allocation4 [shape = 's32[2]{0}', space=sflag, size = 0x8, scoped, tag = 'scoped memory for tpu_custom_call.1']
    %14 = vsyncpa [#allocation4], 0
    %s15 = scalar_lea.sflag [#allocation4], 1
    %16 = vsyncpa %s15, 0
    loop: start=0, step=1, limit=4
    $region2: #{tpu_custom_call.1} parent=1 // loop_pre_header
      _
    $region3: #{tpu_custom_call.1} parent=1 // loop_header
      %s18 = sphi 0, %s22
      %p19 = scmp.ge.s32.totalorder %s18, 4
      %s28 = sphi 0, %s30
      %s31 = sphi 0, %s28
      %s32 = sphi 0, %s31
      %s48 = sphi 0, %s32
      %s52 = sphi 0, %s52
      %s54 = sphi 0, %s52
      %s55 = sphi 0, %s54
      %s69 = sphi 0, %s55
      %s73 = sphi 0, %s73
      %s75 = sphi 0, %s73
      %s76 = sphi 0, %s75
      %s90 = sphi 0, %s76
      %s94 = sphi 0, %s94
      %s96 = sphi 0, %s94
      %s97 = sphi 0, %s96
      %s111 = sphi 0, %s97
      %s115 = sphi 0, %s115
      %s117 = sphi 0, %s115
      %s118 = sphi 0, %s117
      %s132 = sphi 0, %s118
      %s136 = sphi 0, %s136
      %s138 = sphi 0, %s136
      %s139 = sphi 0, %s138
      %s153 = sphi 0, %s139
      %s157 = sphi 0, %s157
      %s159 = sphi 0, %s157
      %s160 = sphi 0, %s159
      %s174 = sphi 0, %s160
      %s180 = sphi 0, %s182
      %s183 = sphi 0, %s180
      %s184 = sphi 0, %s183
      %s200 = sphi 0, %s184
    $region4: #{tpu_custom_call.1} parent=1 // loop_header_branch
      %21 = sbr.rel (%p19) target = $region8
    $region5: #{tpu_custom_call.1} parent=1 // loop_body
      %s23 = ssub.s32 %s18, 1
      %s24 = ssub.s32 %s18, 2
      %s25 = sadd.s32 %s18, 1
      %s26 = ssub.s32 %s18, %s25
      %p27 = scmp.eq.s32.totalorder %s26, 0
      %s29 = sadd.s32 %s28, 1
      %s30 = scalar_select %p27, %s28, %s29
      %p33 = pneg %p27
      %p34 = scmp.eq.s32.totalorder %s18, 1
      %p35 = por %p33, %p34
      %p36 = scmp.ne.s32.totalorder %s28, %s31
      %p37 = scmp.eq.s32.totalorder %s18, 0
      %p38 = por %p36, %p37
      %p39 = scmp.ne.s32.totalorder %s28, %s31
      %p40 = scmp.eq.s32.totalorder %s23, 1
      %p41 = por %p39, %p40
      %p42 = scmp.ne.s32.totalorder %s31, %s32
      %p43 = scmp.eq.s32.totalorder %s23, 0
      %p44 = por %p42, %p43
      %p45 = scmp.ne.s32.totalorder %s31, %s32
      %p46 = scmp.eq.s32.totalorder %s24, 1
      %p47 = por %p45, %p46
      %p49 = scmp.ne.s32.totalorder %s32, %s48
      %p50 = scmp.eq.s32.totalorder %s24, 0
      %p51 = por %p49, %p50
      %s53 = sadd.s32 %s52, 1
      %p56 = scmp.eq.s32.totalorder %s18, 1
      %p57 = scmp.ne.s32.totalorder %s52, %s54
      %p58 = scmp.eq.s32.totalorder %s18, 0
      %p59 = por %p57, %p58
      %p60 = scmp.ne.s32.totalorder %s52, %s54
      %p61 = scmp.eq.s32.totalorder %s23, 1
      %p62 = por %p60, %p61
      %p63 = scmp.ne.s32.totalorder %s54, %s55
      %p64 = scmp.eq.s32.totalorder %s23, 0
      %p65 = por %p63, %p64
      %p66 = scmp.ne.s32.totalorder %s54, %s55
      %p67 = scmp.eq.s32.totalorder %s24, 1
      %p68 = por %p66, %p67
      %p70 = scmp.ne.s32.totalorder %s55, %s69
      %p71 = scmp.eq.s32.totalorder %s24, 0
      %p72 = por %p70, %p71
      %s74 = sadd.s32 %s73, 1
      %p77 = scmp.eq.s32.totalorder %s18, 1
      %p78 = scmp.ne.s32.totalorder %s73, %s75
      %p79 = scmp.eq.s32.totalorder %s18, 0
      %p80 = por %p78, %p79
      %p81 = scmp.ne.s32.totalorder %s73, %s75
      %p82 = scmp.eq.s32.totalorder %s23, 1
      %p83 = por %p81, %p82
      %p84 = scmp.ne.s32.totalorder %s75, %s76
      %p85 = scmp.eq.s32.totalorder %s23, 0
      %p86 = por %p84, %p85
      %p87 = scmp.ne.s32.totalorder %s75, %s76
      %p88 = scmp.eq.s32.totalorder %s24, 1
      %p89 = por %p87, %p88
      %p91 = scmp.ne.s32.totalorder %s76, %s90
      %p92 = scmp.eq.s32.totalorder %s24, 0
      %p93 = por %p91, %p92
      %s95 = sadd.s32 %s94, 1
      %p98 = scmp.eq.s32.totalorder %s18, 1
      %p99 = scmp.ne.s32.totalorder %s94, %s96
      %p100 = scmp.eq.s32.totalorder %s18, 0
      %p101 = por %p99, %p100
      %p102 = scmp.ne.s32.totalorder %s94, %s96
      %p103 = scmp.eq.s32.totalorder %s23, 1
      %p104 = por %p102, %p103
      %p105 = scmp.ne.s32.totalorder %s96, %s97
      %p106 = scmp.eq.s32.totalorder %s23, 0
      %p107 = por %p105, %p106
      %p108 = scmp.ne.s32.totalorder %s96, %s97
      %p109 = scmp.eq.s32.totalorder %s24, 1
      %p110 = por %p108, %p109
      %p112 = scmp.ne.s32.totalorder %s97, %s111
      %p113 = scmp.eq.s32.totalorder %s24, 0
      %p114 = por %p112, %p113
      %s116 = sadd.s32 %s115, 1
      %p119 = scmp.eq.s32.totalorder %s18, 1
      %p120 = scmp.ne.s32.totalorder %s115, %s117
      %p121 = scmp.eq.s32.totalorder %s18, 0
      %p122 = por %p120, %p121
      %p123 = scmp.ne.s32.totalorder %s115, %s117
      %p124 = scmp.eq.s32.totalorder %s23, 1
      %p125 = por %p123, %p124
      %p126 = scmp.ne.s32.totalorder %s117, %s118
      %p127 = scmp.eq.s32.totalorder %s23, 0
      %p128 = por %p126, %p127
      %p129 = scmp.ne.s32.totalorder %s117, %s118
      %p130 = scmp.eq.s32.totalorder %s24, 1
      %p131 = por %p129, %p130
      %p133 = scmp.ne.s32.totalorder %s118, %s132
      %p134 = scmp.eq.s32.totalorder %s24, 0
      %p135 = por %p133, %p134
      %s137 = sadd.s32 %s136, 1
      %p140 = scmp.eq.s32.totalorder %s18, 1
      %p141 = scmp.ne.s32.totalorder %s136, %s138
      %p142 = scmp.eq.s32.totalorder %s18, 0
      %p143 = por %p141, %p142
      %p144 = scmp.ne.s32.totalorder %s136, %s138
      %p145 = scmp.eq.s32.totalorder %s23, 1
      %p146 = por %p144, %p145
      %p147 = scmp.ne.s32.totalorder %s138, %s139
      %p148 = scmp.eq.s32.totalorder %s23, 0
      %p149 = por %p147, %p148
      %p150 = scmp.ne.s32.totalorder %s138, %s139
      %p151 = scmp.eq.s32.totalorder %s24, 1
      %p152 = por %p150, %p151
      %p154 = scmp.ne.s32.totalorder %s139, %s153
      %p155 = scmp.eq.s32.totalorder %s24, 0
      %p156 = por %p154, %p155
      %s158 = sadd.s32 %s157, 1
      %p161 = scmp.eq.s32.totalorder %s18, 1
      %p162 = scmp.ne.s32.totalorder %s157, %s159
      %p163 = scmp.eq.s32.totalorder %s18, 0
      %p164 = por %p162, %p163
      %p165 = scmp.ne.s32.totalorder %s157, %s159
      %p166 = scmp.eq.s32.totalorder %s23, 1
      %p167 = por %p165, %p166
      %p168 = scmp.ne.s32.totalorder %s159, %s160
      %p169 = scmp.eq.s32.totalorder %s23, 0
      %p170 = por %p168, %p169
      %p171 = scmp.ne.s32.totalorder %s159, %s160
      %p172 = scmp.eq.s32.totalorder %s24, 1
      %p173 = por %p171, %p172
      %p175 = scmp.ne.s32.totalorder %s160, %s174
      %p176 = scmp.eq.s32.totalorder %s24, 0
      %p177 = por %p175, %p176
      %s178 = ssub.s32 %s18, %s25
      %p179 = scmp.eq.s32.totalorder %s178, 0
      %s181 = sadd.s32 %s180, 1
      %s182 = scalar_select %p179, %s180, %s181
      %p185 = pneg %p179
      %p186 = scmp.eq.s32.totalorder %s18, 1
      %p187 = por %p185, %p186
      %p188 = scmp.ne.s32.totalorder %s180, %s183
      %p189 = scmp.eq.s32.totalorder %s18, 0
      %p190 = por %p188, %p189
      %p191 = scmp.ne.s32.totalorder %s180, %s183
      %p192 = scmp.eq.s32.totalorder %s23, 1
      %p193 = por %p191, %p192
      %p194 = scmp.ne.s32.totalorder %s183, %s184
      %p195 = scmp.eq.s32.totalorder %s23, 0
      %p196 = por %p194, %p195
      %p197 = scmp.ne.s32.totalorder %s183, %s184
      %p198 = scmp.eq.s32.totalorder %s24, 1
      %p199 = por %p197, %p198
      %p201 = scmp.ne.s32.totalorder %s184, %s200
      %p202 = scmp.eq.s32.totalorder %s24, 0
      %p203 = por %p201, %p202
      %p204 = scmp.le.s32.totalorder 1, %s18
      %p205 = scmp.lt.s32.totalorder %s18, 3
      %p206 = pnand %p204, %p205
      %p207 = pneg %p206
      // Predicated region
      $region9: #{tpu_custom_call.1} parent=5 // pred_check
        _
      $region10: #{tpu_custom_call.1} parent=5 // pred_check_branch
        %209 = sbr.rel (%p206) target = $region12
      $region11: #{tpu_custom_call.1} parent=5 // pred_region
        %s210 = ssub.s32 %s18, 1
        // Predicated region
        $region13: #{tpu_custom_call.1} parent=11 // pred_check
          %p211 = pneg %p65
        $region14: #{tpu_custom_call.1} parent=11 // pred_check_branch
          %213 = sbr.rel (%p211) target = $region16
        $region15: #{tpu_custom_call.1} parent=11 // pred_region
          _
        $region16: #{tpu_custom_call.1} parent=11 // pred_fallthru
          _
        // Predicated region
        $region17: #{tpu_custom_call.1} parent=11 // pred_check
          %p214 = pneg %p86
        $region18: #{tpu_custom_call.1} parent=11 // pred_check_branch
          %216 = sbr.rel (%p214) target = $region20
        $region19: #{tpu_custom_call.1} parent=11 // pred_region
          _
        $region20: #{tpu_custom_call.1} parent=11 // pred_fallthru
          _
        // Predicated region
        $region21: #{tpu_custom_call.1} parent=11 // pred_check
          %p217 = pneg %p107
        $region22: #{tpu_custom_call.1} parent=11 // pred_check_branch
          %219 = sbr.rel (%p217) target = $region24
        $region23: #{tpu_custom_call.1} parent=11 // pred_region
          _
        $region24: #{tpu_custom_call.1} parent=11 // pred_fallthru
          _
        // Predicated region
        $region25: #{tpu_custom_call.1} parent=11 // pred_check
          %p220 = pneg %p128
        $region26: #{tpu_custom_call.1} parent=11 // pred_check_branch
          %222 = sbr.rel (%p220) target = $region28
        $region27: #{tpu_custom_call.1} parent=11 // pred_region
          _
        $region28: #{tpu_custom_call.1} parent=11 // pred_fallthru
          _
        // Predicated region
        $region29: #{tpu_custom_call.1} parent=11 // pred_check
          %p223 = pneg %p149
        $region30: #{tpu_custom_call.1} parent=11 // pred_check_branch
          %225 = sbr.rel (%p223) target = $region32
        $region31: #{tpu_custom_call.1} parent=11 // pred_region
          _
        $region32: #{tpu_custom_call.1} parent=11 // pred_fallthru
          _
        // Predicated region
        $region33: #{tpu_custom_call.1} parent=11 // pred_check
          %p226 = pneg %p170
        $region34: #{tpu_custom_call.1} parent=11 // pred_check_branch
          %228 = sbr.rel (%p226) target = $region36
        $region35: #{tpu_custom_call.1} parent=11 // pred_region
          _
        $region36: #{tpu_custom_call.1} parent=11 // pred_fallthru
          _
      $region12: #{tpu_custom_call.1} parent=5 // pred_fallthru
        _
      %p229 = scmp.lt.s32.totalorder %s18, 2
      // Predicated region
      $region37: #{tpu_custom_call.1} parent=5 // pred_check
        %p230 = pneg %p229
      $region38: #{tpu_custom_call.1} parent=5 // pred_check_branch
        %232 = sbr.rel (%p230) target = $region40
      $region39: #{tpu_custom_call.1} parent=5 // pred_region
        // Predicated region
        $region41: #{tpu_custom_call.1} parent=39 // pred_check
          %p233 = pneg %p38
        $region42: #{tpu_custom_call.1} parent=39 // pred_check_branch
          %235 = sbr.rel (%p233) target = $region44
        $region43: #{tpu_custom_call.1} parent=39 // pred_region
          %s236 = smul.u32 32, %s18
          %p237 = scmp.lt.s32.totalorder %s236, 63
          %s238 = scalar_select %p237, %s236, 63
          %s239 = smul.addr %s238, 8
          %s240 = scalar_lea.vmem %s0, %s239
          %s241 = smul.u32 32, %s18
        $region44: #{tpu_custom_call.1} parent=39 // pred_fallthru
          _
      $region40: #{tpu_custom_call.1} parent=5 // pred_fallthru
        _
      %p242 = scmp.le.s32.totalorder 1, %s18
      %p243 = scmp.lt.s32.totalorder %s18, 3
      %p244 = pnand %p242, %p243
      %p245 = pneg %p244
      // Predicated region
      $region45: #{tpu_custom_call.1} parent=5 // pred_check
        _
      $region46: #{tpu_custom_call.1} parent=5 // pred_check_branch
        %247 = sbr.rel (%p244) target = $region48
      $region47: #{tpu_custom_call.1} parent=5 // pred_region
        %s248 = ssub.s32 %s18, 1
        %s249 = smul.u32 32, %s23
        %p250 = scmp.lt.s32.totalorder %s249, 63
        %s251 = scalar_select %p250, %s249, 63
        %s252 = smul.addr %s251, 8
        %s253 = scalar_lea.vmem %s0, %s252
        %p254 = pneg %p44
        %p255 = pneg %p41
        %p256 = pneg %p65
        %p257 = pneg %p62
        %p258 = pneg %p86
        %p259 = pneg %p83
        %p260 = pneg %p107
        %p261 = pneg %p104
        %p262 = pneg %p128
        %p263 = pneg %p125
        %p264 = pneg %p149
        %p265 = pneg %p146
        %p266 = pneg %p170
        %p267 = pneg %p167
        %p268 = pneg %p196
        %p269 = pneg %p193
        %s270 = sand.u32 %s183, 1
        %s271 = scalar_lea.sflag [#allocation4], %s270
        %s272 = sand.u32 %s183, 1
        %s273 = smul.addr %s272, 2
        %s274 = scalar_lea.vmem [#allocation3], %s273
        %s275 = smul.u32 32, %s23
        %p276 = scmp.lt.s32.totalorder %s275, 63
        %s277 = scalar_select %p276, %s275, 63
        %s278 = smul.addr %s277, 8
        %s279 = scalar_lea.vmem %s0, %s278
        %s280 = smul.u32 32, %s23
        %s281 = smul.u32 2, %s23
        %v282 = vld [vmem:[%s279] sm:$0xff]
        %v283 = vld [vmem:[%s279 + $0x8] sm:$0xff]
        %v284 = vld [vmem:[%s279 + $0x10] sm:$0xff]
        %v285 = vld [vmem:[%s279 + $0x18] sm:$0xff]
        %v286 = vld [vmem:[%s279 + $0x20] sm:$0xff]
        %v287 = vld [vmem:[%s279 + $0x28] sm:$0xff]
        %v288 = vld [vmem:[%s279 + $0x30] sm:$0xff]
        %v289 = vld [vmem:[%s279 + $0x38] sm:$0xff]
        %v290 = vld [vmem:[%s279 + $0x40] sm:$0xff]
        %v291 = vld [vmem:[%s279 + $0x48] sm:$0xff]
        %v292 = vld [vmem:[%s279 + $0x50] sm:$0xff]
        %v293 = vld [vmem:[%s279 + $0x58] sm:$0xff]
        %v294 = vld [vmem:[%s279 + $0x60] sm:$0xff]
        %v295 = vld [vmem:[%s279 + $0x68] sm:$0xff]
        %v296 = vld [vmem:[%s279 + $0x70] sm:$0xff]
        %v297 = vld [vmem:[%s279 + $0x78] sm:$0xff]
        %v298 = vld [vmem:[%s279 + $0x80] sm:$0xff]
        %v299 = vld [vmem:[%s279 + $0x88] sm:$0xff]
        %v300 = vld [vmem:[%s279 + $0x90] sm:$0xff]
        %v301 = vld [vmem:[%s279 + $0x98] sm:$0xff]
        %v302 = vld [vmem:[%s279 + $0xa0] sm:$0xff]
        %v303 = vld [vmem:[%s279 + $0xa8] sm:$0xff]
        %v304 = vld [vmem:[%s279 + $0xb0] sm:$0xff]
        %v305 = vld [vmem:[%s279 + $0xb8] sm:$0xff]
        %v306 = vld [vmem:[%s279 + $0xc0] sm:$0xff]
        %v307 = vld [vmem:[%s279 + $0xc8] sm:$0xff]
        %v308 = vld [vmem:[%s279 + $0xd0] sm:$0xff]
        %v309 = vld [vmem:[%s279 + $0xd8] sm:$0xff]
        %v310 = vld [vmem:[%s279 + $0xe0] sm:$0xff]
        %v311 = vld [vmem:[%s279 + $0xe8] sm:$0xff]
        %v312 = vld [vmem:[%s279 + $0xf0] sm:$0xff]
        %v313 = vld [vmem:[%s279 + $0xf8] sm:$0xff]
        %v314 = vlaneseq
        %v315 = vand.u32 %v314, 127
        %v316 = vadd.s32 %v315, 128
        %317 = vset.pattern.permute.xlu0 0
        %318 = vperm.xlu0 %317, %v282
        %v319 = vpop.permute.xlu0 %318
        %320 = vset.pattern.permute.xlu0 0
        %321 = vperm.xlu0 %320, %v283
        %v322 = vpop.permute.xlu0 %321
        %323 = vset.pattern.permute.xlu0 0
        %324 = vperm.xlu0 %323, %v284
        %v325 = vpop.permute.xlu0 %324
        %326 = vset.pattern.permute.xlu0 0
        %327 = vperm.xlu0 %326, %v285
        %v328 = vpop.permute.xlu0 %327
        %329 = vset.pattern.permute.xlu0 0
        %330 = vperm.xlu0 %329, %v286
        %v331 = vpop.permute.xlu0 %330
        %332 = vset.pattern.permute.xlu0 0
        %333 = vperm.xlu0 %332, %v287
        %v334 = vpop.permute.xlu0 %333
        %335 = vset.pattern.permute.xlu0 0
        %336 = vperm.xlu0 %335, %v288
        %v337 = vpop.permute.xlu0 %336
        %338 = vset.pattern.permute.xlu0 0
        %339 = vperm.xlu0 %338, %v289
        %v340 = vpop.permute.xlu0 %339
        %341 = vset.pattern.permute.xlu0 0
        %342 = vperm.xlu0 %341, %v290
        %v343 = vpop.permute.xlu0 %342
        %344 = vset.pattern.permute.xlu0 0
        %345 = vperm.xlu0 %344, %v291
        %v346 = vpop.permute.xlu0 %345
        %347 = vset.pattern.permute.xlu0 0
        %348 = vperm.xlu0 %347, %v292
        %v349 = vpop.permute.xlu0 %348
        %350 = vset.pattern.permute.xlu0 0
        %351 = vperm.xlu0 %350, %v293
        %v352 = vpop.permute.xlu0 %351
        %353 = vset.pattern.permute.xlu0 0
        %354 = vperm.xlu0 %353, %v294
        %v355 = vpop.permute.xlu0 %354
        %356 = vset.pattern.permute.xlu0 0
        %357 = vperm.xlu0 %356, %v295
        %v358 = vpop.permute.xlu0 %357
        %359 = vset.pattern.permute.xlu0 0
        %360 = vperm.xlu0 %359, %v296
        %v361 = vpop.permute.xlu0 %360
        %362 = vset.pattern.permute.xlu0 0
        %363 = vperm.xlu0 %362, %v297
        %v364 = vpop.permute.xlu0 %363
        %365 = vset.pattern.permute.xlu0 0
        %366 = vperm.xlu0 %365, %v298
        %v367 = vpop.permute.xlu0 %366
        %368 = vset.pattern.permute.xlu0 0
        %369 = vperm.xlu0 %368, %v299
        %v370 = vpop.permute.xlu0 %369
        %371 = vset.pattern.permute.xlu0 0
        %372 = vperm.xlu0 %371, %v300
        %v373 = vpop.permute.xlu0 %372
        %374 = vset.pattern.permute.xlu0 0
        %375 = vperm.xlu0 %374, %v301
        %v376 = vpop.permute.xlu0 %375
        %377 = vset.pattern.permute.xlu0 0
        %378 = vperm.xlu0 %377, %v302
        %v379 = vpop.permute.xlu0 %378
        %380 = vset.pattern.permute.xlu0 0
        %381 = vperm.xlu0 %380, %v303
        %v382 = vpop.permute.xlu0 %381
        %383 = vset.pattern.permute.xlu0 0
        %384 = vperm.xlu0 %383, %v304
        %v385 = vpop.permute.xlu0 %384
        %386 = vset.pattern.permute.xlu0 0
        %387 = vperm.xlu0 %386, %v305
        %v388 = vpop.permute.xlu0 %387
        %389 = vset.pattern.permute.xlu0 0
        %390 = vperm.xlu0 %389, %v306
        %v391 = vpop.permute.xlu0 %390
        %392 = vset.pattern.permute.xlu0 0
        %393 = vperm.xlu0 %392, %v307
        %v394 = vpop.permute.xlu0 %393
        %395 = vset.pattern.permute.xlu0 0
        %396 = vperm.xlu0 %395, %v308
        %v397 = vpop.permute.xlu0 %396
        %398 = vset.pattern.permute.xlu0 0
        %399 = vperm.xlu0 %398, %v309
        %v400 = vpop.permute.xlu0 %399
        %401 = vset.pattern.permute.xlu0 0
        %402 = vperm.xlu0 %401, %v310
        %v403 = vpop.permute.xlu0 %402
        %404 = vset.pattern.permute.xlu0 0
        %405 = vperm.xlu0 %404, %v311
        %v406 = vpop.permute.xlu0 %405
        %407 = vset.pattern.permute.xlu0 0
        %408 = vperm.xlu0 %407, %v312
        %v409 = vpop.permute.xlu0 %408
        %410 = vset.pattern.permute.xlu0 0
        %411 = vperm.xlu0 %410, %v313
        %v412 = vpop.permute.xlu0 %411
        %vm413 = vcmp.eq.s32.totalorder %v315, %v319
        %vm414 = vcmp.eq.s32.totalorder %v316, %v319
        %vm415 = vcmp.eq.s32.totalorder %v315, %v322
        %vm416 = vcmp.eq.s32.totalorder %v316, %v322
        %vm417 = vcmp.eq.s32.totalorder %v315, %v325
        %vm418 = vcmp.eq.s32.totalorder %v316, %v325
        %vm419 = vcmp.eq.s32.totalorder %v315, %v328
        %vm420 = vcmp.eq.s32.totalorder %v316, %v328
        %vm421 = vcmp.eq.s32.totalorder %v315, %v331
        %vm422 = vcmp.eq.s32.totalorder %v316, %v331
        %vm423 = vcmp.eq.s32.totalorder %v315, %v334
        %vm424 = vcmp.eq.s32.totalorder %v316, %v334
        %vm425 = vcmp.eq.s32.totalorder %v315, %v337
        %vm426 = vcmp.eq.s32.totalorder %v316, %v337
        %vm427 = vcmp.eq.s32.totalorder %v315, %v340
        %vm428 = vcmp.eq.s32.totalorder %v316, %v340
        %vm429 = vcmp.eq.s32.totalorder %v315, %v343
        %vm430 = vcmp.eq.s32.totalorder %v316, %v343
        %vm431 = vcmp.eq.s32.totalorder %v315, %v346
        %vm432 = vcmp.eq.s32.totalorder %v316, %v346
        %vm433 = vcmp.eq.s32.totalorder %v315, %v349
        %vm434 = vcmp.eq.s32.totalorder %v316, %v349
        %vm435 = vcmp.eq.s32.totalorder %v315, %v352
        %vm436 = vcmp.eq.s32.totalorder %v316, %v352
        %vm437 = vcmp.eq.s32.totalorder %v315, %v355
        %vm438 = vcmp.eq.s32.totalorder %v316, %v355
        %vm439 = vcmp.eq.s32.totalorder %v315, %v358
        %vm440 = vcmp.eq.s32.totalorder %v316, %v358
        %vm441 = vcmp.eq.s32.totalorder %v315, %v361
        %vm442 = vcmp.eq.s32.totalorder %v316, %v361
        %vm443 = vcmp.eq.s32.totalorder %v315, %v364
        %vm444 = vcmp.eq.s32.totalorder %v316, %v364
        %vm445 = vcmp.eq.s32.totalorder %v315, %v367
        %vm446 = vcmp.eq.s32.totalorder %v316, %v367
        %vm447 = vcmp.eq.s32.totalorder %v315, %v370
        %vm448 = vcmp.eq.s32.totalorder %v316, %v370
        %vm449 = vcmp.eq.s32.totalorder %v315, %v373
        %vm450 = vcmp.eq.s32.totalorder %v316, %v373
        %vm451 = vcmp.eq.s32.totalorder %v315, %v376
        %vm452 = vcmp.eq.s32.totalorder %v316, %v376
        %vm453 = vcmp.eq.s32.totalorder %v315, %v379
        %vm454 = vcmp.eq.s32.totalorder %v316, %v379
        %vm455 = vcmp.eq.s32.totalorder %v315, %v382
        %vm456 = vcmp.eq.s32.totalorder %v316, %v382
        %vm457 = vcmp.eq.s32.totalorder %v315, %v385
        %vm458 = vcmp.eq.s32.totalorder %v316, %v385
        %vm459 = vcmp.eq.s32.totalorder %v315, %v388
        %vm460 = vcmp.eq.s32.totalorder %v316, %v388
        %vm461 = vcmp.eq.s32.totalorder %v315, %v391
        %vm462 = vcmp.eq.s32.totalorder %v316, %v391
        %vm463 = vcmp.eq.s32.totalorder %v315, %v394
        %vm464 = vcmp.eq.s32.totalorder %v316, %v394
        %vm465 = vcmp.eq.s32.totalorder %v315, %v397
        %vm466 = vcmp.eq.s32.totalorder %v316, %v397
        %vm467 = vcmp.eq.s32.totalorder %v315, %v400
        %vm468 = vcmp.eq.s32.totalorder %v316, %v400
        %vm469 = vcmp.eq.s32.totalorder %v315, %v403
        %vm470 = vcmp.eq.s32.totalorder %v316, %v403
        %vm471 = vcmp.eq.s32.totalorder %v315, %v406
        %vm472 = vcmp.eq.s32.totalorder %v316, %v406
        %vm473 = vcmp.eq.s32.totalorder %v315, %v409
        %vm474 = vcmp.eq.s32.totalorder %v316, %v409
        %vm475 = vcmp.eq.s32.totalorder %v315, %v412
        %vm476 = vcmp.eq.s32.totalorder %v316, %v412
        %v477 = vsel %vm413, 1, 0
        %v478 = vsel %vm414, 1, 0
        %v479 = vsel %vm415, 1, 0
        %v480 = vsel %vm416, 1, 0
        %v481 = vsel %vm417, 1, 0
        %v482 = vsel %vm418, 1, 0
        %v483 = vsel %vm419, 1, 0
        %v484 = vsel %vm420, 1, 0
        %v485 = vsel %vm421, 1, 0
        %v486 = vsel %vm422, 1, 0
        %v487 = vsel %vm423, 1, 0
        %v488 = vsel %vm424, 1, 0
        %v489 = vsel %vm425, 1, 0
        %v490 = vsel %vm426, 1, 0
        %v491 = vsel %vm427, 1, 0
        %v492 = vsel %vm428, 1, 0
        %v493 = vsel %vm429, 1, 0
        %v494 = vsel %vm430, 1, 0
        %v495 = vsel %vm431, 1, 0
        %v496 = vsel %vm432, 1, 0
        %v497 = vsel %vm433, 1, 0
        %v498 = vsel %vm434, 1, 0
        %v499 = vsel %vm435, 1, 0
        %v500 = vsel %vm436, 1, 0
        %v501 = vsel %vm437, 1, 0
        %v502 = vsel %vm438, 1, 0
        %v503 = vsel %vm439, 1, 0
        %v504 = vsel %vm440, 1, 0
        %v505 = vsel %vm441, 1, 0
        %v506 = vsel %vm442, 1, 0
        %v507 = vsel %vm443, 1, 0
        %v508 = vsel %vm444, 1, 0
        %v509 = vsel %vm445, 1, 0
        %v510 = vsel %vm446, 1, 0
        %v511 = vsel %vm447, 1, 0
        %v512 = vsel %vm448, 1, 0
        %v513 = vsel %vm449, 1, 0
        %v514 = vsel %vm450, 1, 0
        %v515 = vsel %vm451, 1, 0
        %v516 = vsel %vm452, 1, 0
        %v517 = vsel %vm453, 1, 0
        %v518 = vsel %vm454, 1, 0
        %v519 = vsel %vm455, 1, 0
        %v520 = vsel %vm456, 1, 0
        %v521 = vsel %vm457, 1, 0
        %v522 = vsel %vm458, 1, 0
        %v523 = vsel %vm459, 1, 0
        %v524 = vsel %vm460, 1, 0
        %v525 = vsel %vm461, 1, 0
        %v526 = vsel %vm462, 1, 0
        %v527 = vsel %vm463, 1, 0
        %v528 = vsel %vm464, 1, 0
        %v529 = vsel %vm465, 1, 0
        %v530 = vsel %vm466, 1, 0
        %v531 = vsel %vm467, 1, 0
        %v532 = vsel %vm468, 1, 0
        %v533 = vsel %vm469, 1, 0
        %v534 = vsel %vm470, 1, 0
        %v535 = vsel %vm471, 1, 0
        %v536 = vsel %vm472, 1, 0
        %v537 = vsel %vm473, 1, 0
        %v538 = vsel %vm474, 1, 0
        %v539 = vsel %vm475, 1, 0
        %v540 = vsel %vm476, 1, 0
        %v541 = vcvt.s32.f32 %v477
        %v542 = vcvt.s32.f32 %v478
        %v543 = vcvt.s32.f32 %v479
        %v544 = vcvt.s32.f32 %v480
        %v545 = vcvt.s32.f32 %v481
        %v546 = vcvt.s32.f32 %v482
        %v547 = vcvt.s32.f32 %v483
        %v548 = vcvt.s32.f32 %v484
        %v549 = vcvt.s32.f32 %v485
        %v550 = vcvt.s32.f32 %v486
        %v551 = vcvt.s32.f32 %v487
        %v552 = vcvt.s32.f32 %v488
        %v553 = vcvt.s32.f32 %v489
        %v554 = vcvt.s32.f32 %v490
        %v555 = vcvt.s32.f32 %v491
        %v556 = vcvt.s32.f32 %v492
        %v557 = vcvt.s32.f32 %v493
        %v558 = vcvt.s32.f32 %v494
        %v559 = vcvt.s32.f32 %v495
        %v560 = vcvt.s32.f32 %v496
        %v561 = vcvt.s32.f32 %v497
        %v562 = vcvt.s32.f32 %v498
        %v563 = vcvt.s32.f32 %v499
        %v564 = vcvt.s32.f32 %v500
        %v565 = vcvt.s32.f32 %v501
        %v566 = vcvt.s32.f32 %v502
        %v567 = vcvt.s32.f32 %v503
        %v568 = vcvt.s32.f32 %v504
        %v569 = vcvt.s32.f32 %v505
        %v570 = vcvt.s32.f32 %v506
        %v571 = vcvt.s32.f32 %v507
        %v572 = vcvt.s32.f32 %v508
        %v573 = vcvt.s32.f32 %v509
        %v574 = vcvt.s32.f32 %v510
        %v575 = vcvt.s32.f32 %v511
        %v576 = vcvt.s32.f32 %v512
        %v577 = vcvt.s32.f32 %v513
        %v578 = vcvt.s32.f32 %v514
        %v579 = vcvt.s32.f32 %v515
        %v580 = vcvt.s32.f32 %v516
        %v581 = vcvt.s32.f32 %v517
        %v582 = vcvt.s32.f32 %v518
        %v583 = vcvt.s32.f32 %v519
        %v584 = vcvt.s32.f32 %v520
        %v585 = vcvt.s32.f32 %v521
        %v586 = vcvt.s32.f32 %v522
        %v587 = vcvt.s32.f32 %v523
        %v588 = vcvt.s32.f32 %v524
        %v589 = vcvt.s32.f32 %v525
        %v590 = vcvt.s32.f32 %v526
        %v591 = vcvt.s32.f32 %v527
        %v592 = vcvt.s32.f32 %v528
        %v593 = vcvt.s32.f32 %v529
        %v594 = vcvt.s32.f32 %v530
        %v595 = vcvt.s32.f32 %v531
        %v596 = vcvt.s32.f32 %v532
        %v597 = vcvt.s32.f32 %v533
        %v598 = vcvt.s32.f32 %v534
        %v599 = vcvt.s32.f32 %v535
        %v600 = vcvt.s32.f32 %v536
        %v601 = vcvt.s32.f32 %v537
        %v602 = vcvt.s32.f32 %v538
        %v603 = vcvt.s32.f32 %v539
        %v604 = vcvt.s32.f32 %v540
        %v605 = vadd.s32 %v282, 55
        %v606 = vadd.s32 %v283, 55
        %v607 = vadd.s32 %v284, 55
        %v608 = vadd.s32 %v285, 55
        %v609 = vadd.s32 %v286, 55
        %v610 = vadd.s32 %v287, 55
        %v611 = vadd.s32 %v288, 55
        %v612 = vadd.s32 %v289, 55
        %v613 = vadd.s32 %v290, 55
        %v614 = vadd.s32 %v291, 55
        %v615 = vadd.s32 %v292, 55
        %v616 = vadd.s32 %v293, 55
        %v617 = vadd.s32 %v294, 55
        %v618 = vadd.s32 %v295, 55
        %v619 = vadd.s32 %v296, 55
        %v620 = vadd.s32 %v297, 55
        %v621 = vadd.s32 %v298, 55
        %v622 = vadd.s32 %v299, 55
        %v623 = vadd.s32 %v300, 55
        %v624 = vadd.s32 %v301, 55
        %v625 = vadd.s32 %v302, 55
        %v626 = vadd.s32 %v303, 55
        %v627 = vadd.s32 %v304, 55
        %v628 = vadd.s32 %v305, 55
        %v629 = vadd.s32 %v306, 55
        %v630 = vadd.s32 %v307, 55
        %v631 = vadd.s32 %v308, 55
        %v632 = vadd.s32 %v309, 55
        %v633 = vadd.s32 %v310, 55
        %v634 = vadd.s32 %v311, 55
        %v635 = vadd.s32 %v312, 55
        %v636 = vadd.s32 %v313, 55
        %637 = vset.pattern.permute.xlu0 1
        %638 = vperm.xlu0 %637, %v605
        %v639 = vpop.permute.xlu0 %638
        %640 = vset.pattern.permute.xlu0 1
        %641 = vperm.xlu0 %640, %v606
        %v642 = vpop.permute.xlu0 %641
        %643 = vset.pattern.permute.xlu0 1
        %644 = vperm.xlu0 %643, %v607
        %v645 = vpop.permute.xlu0 %644
        %646 = vset.pattern.permute.xlu0 1
        %647 = vperm.xlu0 %646, %v608
        %v648 = vpop.permute.xlu0 %647
        %649 = vset.pattern.permute.xlu0 1
        %650 = vperm.xlu0 %649, %v609
        %v651 = vpop.permute.xlu0 %650
        %652 = vset.pattern.permute.xlu0 1
        %653 = vperm.xlu0 %652, %v610
        %v654 = vpop.permute.xlu0 %653
        %655 = vset.pattern.permute.xlu0 1
        %656 = vperm.xlu0 %655, %v611
        %v657 = vpop.permute.xlu0 %656
        %658 = vset.pattern.permute.xlu0 1
        %659 = vperm.xlu0 %658, %v612
        %v660 = vpop.permute.xlu0 %659
        %661 = vset.pattern.permute.xlu0 1
        %662 = vperm.xlu0 %661, %v613
        %v663 = vpop.permute.xlu0 %662
        %664 = vset.pattern.permute.xlu0 1
        %665 = vperm.xlu0 %664, %v614
        %v666 = vpop.permute.xlu0 %665
        %667 = vset.pattern.permute.xlu0 1
        %668 = vperm.xlu0 %667, %v615
        %v669 = vpop.permute.xlu0 %668
        %670 = vset.pattern.permute.xlu0 1
        %671 = vperm.xlu0 %670, %v616
        %v672 = vpop.permute.xlu0 %671
        %673 = vset.pattern.permute.xlu0 1
        %674 = vperm.xlu0 %673, %v617
        %v675 = vpop.permute.xlu0 %674
        %676 = vset.pattern.permute.xlu0 1
        %677 = vperm.xlu0 %676, %v618
        %v678 = vpop.permute.xlu0 %677
        %679 = vset.pattern.permute.xlu0 1
        %680 = vperm.xlu0 %679, %v619
        %v681 = vpop.permute.xlu0 %680
        %682 = vset.pattern.permute.xlu0 1
        %683 = vperm.xlu0 %682, %v620
        %v684 = vpop.permute.xlu0 %683
        %685 = vset.pattern.permute.xlu0 1
        %686 = vperm.xlu0 %685, %v621
        %v687 = vpop.permute.xlu0 %686
        %688 = vset.pattern.permute.xlu0 1
        %689 = vperm.xlu0 %688, %v622
        %v690 = vpop.permute.xlu0 %689
        %691 = vset.pattern.permute.xlu0 1
        %692 = vperm.xlu0 %691, %v623
        %v693 = vpop.permute.xlu0 %692
        %694 = vset.pattern.permute.xlu0 1
        %695 = vperm.xlu0 %694, %v624
        %v696 = vpop.permute.xlu0 %695
        %697 = vset.pattern.permute.xlu0 1
        %698 = vperm.xlu0 %697, %v625
        %v699 = vpop.permute.xlu0 %698
        %700 = vset.pattern.permute.xlu0 1
        %701 = vperm.xlu0 %700, %v626
        %v702 = vpop.permute.xlu0 %701
        %703 = vset.pattern.permute.xlu0 1
        %704 = vperm.xlu0 %703, %v627
        %v705 = vpop.permute.xlu0 %704
        %706 = vset.pattern.permute.xlu0 1
        %707 = vperm.xlu0 %706, %v628
        %v708 = vpop.permute.xlu0 %707
        %709 = vset.pattern.permute.xlu0 1
        %710 = vperm.xlu0 %709, %v629
        %v711 = vpop.permute.xlu0 %710
        %712 = vset.pattern.permute.xlu0 1
        %713 = vperm.xlu0 %712, %v630
        %v714 = vpop.permute.xlu0 %713
        %715 = vset.pattern.permute.xlu0 1
        %716 = vperm.xlu0 %715, %v631
        %v717 = vpop.permute.xlu0 %716
        %718 = vset.pattern.permute.xlu0 1
        %719 = vperm.xlu0 %718, %v632
        %v720 = vpop.permute.xlu0 %719
        %721 = vset.pattern.permute.xlu0 1
        %722 = vperm.xlu0 %721, %v633
        %v723 = vpop.permute.xlu0 %722
        %724 = vset.pattern.permute.xlu0 1
        %725 = vperm.xlu0 %724, %v634
        %v726 = vpop.permute.xlu0 %725
        %727 = vset.pattern.permute.xlu0 1
        %728 = vperm.xlu0 %727, %v635
        %v729 = vpop.permute.xlu0 %728
        %730 = vset.pattern.permute.xlu0 1
        %731 = vperm.xlu0 %730, %v636
        %v732 = vpop.permute.xlu0 %731
        %vm733 = vcmp.eq.s32.totalorder %v315, %v639
        %vm734 = vcmp.eq.s32.totalorder %v316, %v639
        %vm735 = vcmp.eq.s32.totalorder %v315, %v642
        %vm736 = vcmp.eq.s32.totalorder %v316, %v642
        %vm737 = vcmp.eq.s32.totalorder %v315, %v645
        %vm738 = vcmp.eq.s32.totalorder %v316, %v645
        %vm739 = vcmp.eq.s32.totalorder %v315, %v648
        %vm740 = vcmp.eq.s32.totalorder %v316, %v648
        %vm741 = vcmp.eq.s32.totalorder %v315, %v651
        %vm742 = vcmp.eq.s32.totalorder %v316, %v651
        %vm743 = vcmp.eq.s32.totalorder %v315, %v654
        %vm744 = vcmp.eq.s32.totalorder %v316, %v654
        %vm745 = vcmp.eq.s32.totalorder %v315, %v657
        %vm746 = vcmp.eq.s32.totalorder %v316, %v657
        %vm747 = vcmp.eq.s32.totalorder %v315, %v660
        %vm748 = vcmp.eq.s32.totalorder %v316, %v660
        %vm749 = vcmp.eq.s32.totalorder %v315, %v663
        %vm750 = vcmp.eq.s32.totalorder %v316, %v663
        %vm751 = vcmp.eq.s32.totalorder %v315, %v666
        %vm752 = vcmp.eq.s32.totalorder %v316, %v666
        %vm753 = vcmp.eq.s32.totalorder %v315, %v669
        %vm754 = vcmp.eq.s32.totalorder %v316, %v669
        %vm755 = vcmp.eq.s32.totalorder %v315, %v672
        %vm756 = vcmp.eq.s32.totalorder %v316, %v672
        %vm757 = vcmp.eq.s32.totalorder %v315, %v675
        %vm758 = vcmp.eq.s32.totalorder %v316, %v675
        %vm759 = vcmp.eq.s32.totalorder %v315, %v678
        %vm760 = vcmp.eq.s32.totalorder %v316, %v678
        %vm761 = vcmp.eq.s32.totalorder %v315, %v681
        %vm762 = vcmp.eq.s32.totalorder %v316, %v681
        %vm763 = vcmp.eq.s32.totalorder %v315, %v684
        %vm764 = vcmp.eq.s32.totalorder %v316, %v684
        %vm765 = vcmp.eq.s32.totalorder %v315, %v687
        %vm766 = vcmp.eq.s32.totalorder %v316, %v687
        %vm767 = vcmp.eq.s32.totalorder %v315, %v690
        %vm768 = vcmp.eq.s32.totalorder %v316, %v690
        %vm769 = vcmp.eq.s32.totalorder %v315, %v693
        %vm770 = vcmp.eq.s32.totalorder %v316, %v693
        %vm771 = vcmp.eq.s32.totalorder %v315, %v696
        %vm772 = vcmp.eq.s32.totalorder %v316, %v696
        %vm773 = vcmp.eq.s32.totalorder %v315, %v699
        %vm774 = vcmp.eq.s32.totalorder %v316, %v699
        %vm775 = vcmp.eq.s32.totalorder %v315, %v702
        %vm776 = vcmp.eq.s32.totalorder %v316, %v702
        %vm777 = vcmp.eq.s32.totalorder %v315, %v705
        %vm778 = vcmp.eq.s32.totalorder %v316, %v705
        %vm779 = vcmp.eq.s32.totalorder %v315, %v708
        %vm780 = vcmp.eq.s32.totalorder %v316, %v708
        %vm781 = vcmp.eq.s32.totalorder %v315, %v711
        %vm782 = vcmp.eq.s32.totalorder %v316, %v711
        %vm783 = vcmp.eq.s32.totalorder %v315, %v714
        %vm784 = vcmp.eq.s32.totalorder %v316, %v714
        %vm785 = vcmp.eq.s32.totalorder %v315, %v717
        %vm786 = vcmp.eq.s32.totalorder %v316, %v717
        %vm787 = vcmp.eq.s32.totalorder %v315, %v720
        %vm788 = vcmp.eq.s32.totalorder %v316, %v720
        %vm789 = vcmp.eq.s32.totalorder %v315, %v723
        %vm790 = vcmp.eq.s32.totalorder %v316, %v723
        %vm791 = vcmp.eq.s32.totalorder %v315, %v726
        %vm792 = vcmp.eq.s32.totalorder %v316, %v726
        %vm793 = vcmp.eq.s32.totalorder %v315, %v729
        %vm794 = vcmp.eq.s32.totalorder %v316, %v729
        %vm795 = vcmp.eq.s32.totalorder %v315, %v732
        %vm796 = vcmp.eq.s32.totalorder %v316, %v732
        %v797 = vsel %vm733, 1, 0
        %v798 = vsel %vm734, 1, 0
        %v799 = vsel %vm735, 1, 0
        %v800 = vsel %vm736, 1, 0
        %v801 = vsel %vm737, 1, 0
        %v802 = vsel %vm738, 1, 0
        %v803 = vsel %vm739, 1, 0
        %v804 = vsel %vm740, 1, 0
        %v805 = vsel %vm741, 1, 0
        %v806 = vsel %vm742, 1, 0
        %v807 = vsel %vm743, 1, 0
        %v808 = vsel %vm744, 1, 0
        %v809 = vsel %vm745, 1, 0
        %v810 = vsel %vm746, 1, 0
        %v811 = vsel %vm747, 1, 0
        %v812 = vsel %vm748, 1, 0
        %v813 = vsel %vm749, 1, 0
        %v814 = vsel %vm750, 1, 0
        %v815 = vsel %vm751, 1, 0
        %v816 = vsel %vm752, 1, 0
        %v817 = vsel %vm753, 1, 0
        %v818 = vsel %vm754, 1, 0
        %v819 = vsel %vm755, 1, 0
        %v820 = vsel %vm756, 1, 0
        %v821 = vsel %vm757, 1, 0
        %v822 = vsel %vm758, 1, 0
        %v823 = vsel %vm759, 1, 0
        %v824 = vsel %vm760, 1, 0
        %v825 = vsel %vm761, 1, 0
        %v826 = vsel %vm762, 1, 0
        %v827 = vsel %vm763, 1, 0
        %v828 = vsel %vm764, 1, 0
        %v829 = vsel %vm765, 1, 0
        %v830 = vsel %vm766, 1, 0
        %v831 = vsel %vm767, 1, 0
        %v832 = vsel %vm768, 1, 0
        %v833 = vsel %vm769, 1, 0
        %v834 = vsel %vm770, 1, 0
        %v835 = vsel %vm771, 1, 0
        %v836 = vsel %vm772, 1, 0
        %v837 = vsel %vm773, 1, 0
        %v838 = vsel %vm774, 1, 0
        %v839 = vsel %vm775, 1, 0
        %v840 = vsel %vm776, 1, 0
        %v841 = vsel %vm777, 1, 0
        %v842 = vsel %vm778, 1, 0
        %v843 = vsel %vm779, 1, 0
        %v844 = vsel %vm780, 1, 0
        %v845 = vsel %vm781, 1, 0
        %v846 = vsel %vm782, 1, 0
        %v847 = vsel %vm783, 1, 0
        %v848 = vsel %vm784, 1, 0
        %v849 = vsel %vm785, 1, 0
        %v850 = vsel %vm786, 1, 0
        %v851 = vsel %vm787, 1, 0
        %v852 = vsel %vm788, 1, 0
        %v853 = vsel %vm789, 1, 0
        %v854 = vsel %vm790, 1, 0
        %v855 = vsel %vm791, 1, 0
        %v856 = vsel %vm792, 1, 0
        %v857 = vsel %vm793, 1, 0
        %v858 = vsel %vm794, 1, 0
        %v859 = vsel %vm795, 1, 0
        %v860 = vsel %vm796, 1, 0
        %v861 = vcvt.s32.f32 %v797
        %v862 = vcvt.s32.f32 %v798
        %v863 = vcvt.s32.f32 %v799
        %v864 = vcvt.s32.f32 %v800
        %v865 = vcvt.s32.f32 %v801
        %v866 = vcvt.s32.f32 %v802
        %v867 = vcvt.s32.f32 %v803
        %v868 = vcvt.s32.f32 %v804
        %v869 = vcvt.s32.f32 %v805
        %v870 = vcvt.s32.f32 %v806
        %v871 = vcvt.s32.f32 %v807
        %v872 = vcvt.s32.f32 %v808
        %v873 = vcvt.s32.f32 %v809
        %v874 = vcvt.s32.f32 %v810
        %v875 = vcvt.s32.f32 %v811
        %v876 = vcvt.s32.f32 %v812
        %v877 = vcvt.s32.f32 %v813
        %v878 = vcvt.s32.f32 %v814
        %v879 = vcvt.s32.f32 %v815
        %v880 = vcvt.s32.f32 %v816
        %v881 = vcvt.s32.f32 %v817
        %v882 = vcvt.s32.f32 %v818
        %v883 = vcvt.s32.f32 %v819
        %v884 = vcvt.s32.f32 %v820
        %v885 = vcvt.s32.f32 %v821
        %v886 = vcvt.s32.f32 %v822
        %v887 = vcvt.s32.f32 %v823
        %v888 = vcvt.s32.f32 %v824
        %v889 = vcvt.s32.f32 %v825
        %v890 = vcvt.s32.f32 %v826
        %v891 = vcvt.s32.f32 %v827
        %v892 = vcvt.s32.f32 %v828
        %v893 = vcvt.s32.f32 %v829
        %v894 = vcvt.s32.f32 %v830
        %v895 = vcvt.s32.f32 %v831
        %v896 = vcvt.s32.f32 %v832
        %v897 = vcvt.s32.f32 %v833
        %v898 = vcvt.s32.f32 %v834
        %v899 = vcvt.s32.f32 %v835
        %v900 = vcvt.s32.f32 %v836
        %v901 = vcvt.s32.f32 %v837
        %v902 = vcvt.s32.f32 %v838
        %v903 = vcvt.s32.f32 %v839
        %v904 = vcvt.s32.f32 %v840
        %v905 = vcvt.s32.f32 %v841
        %v906 = vcvt.s32.f32 %v842
        %v907 = vcvt.s32.f32 %v843
        %v908 = vcvt.s32.f32 %v844
        %v909 = vcvt.s32.f32 %v845
        %v910 = vcvt.s32.f32 %v846
        %v911 = vcvt.s32.f32 %v847
        %v912 = vcvt.s32.f32 %v848
        %v913 = vcvt.s32.f32 %v849
        %v914 = vcvt.s32.f32 %v850
        %v915 = vcvt.s32.f32 %v851
        %v916 = vcvt.s32.f32 %v852
        %v917 = vcvt.s32.f32 %v853
        %v918 = vcvt.s32.f32 %v854
        %v919 = vcvt.s32.f32 %v855
        %v920 = vcvt.s32.f32 %v856
        %v921 = vcvt.s32.f32 %v857
        %v922 = vcvt.s32.f32 %v858
        %v923 = vcvt.s32.f32 %v859
        %v924 = vcvt.s32.f32 %v860
        %v925 = vadd.f32 %v541, %v861
        %v926 = vadd.f32 %v542, %v862
        %v927 = vadd.f32 %v543, %v863
        %v928 = vadd.f32 %v544, %v864
        %v929 = vadd.f32 %v545, %v865
        %v930 = vadd.f32 %v546, %v866
        %v931 = vadd.f32 %v547, %v867
        %v932 = vadd.f32 %v548, %v868
        %v933 = vadd.f32 %v549, %v869
        %v934 = vadd.f32 %v550, %v870
        %v935 = vadd.f32 %v551, %v871
        %v936 = vadd.f32 %v552, %v872
        %v937 = vadd.f32 %v553, %v873
        %v938 = vadd.f32 %v554, %v874
        %v939 = vadd.f32 %v555, %v875
        %v940 = vadd.f32 %v556, %v876
        %v941 = vadd.f32 %v557, %v877
        %v942 = vadd.f32 %v558, %v878
        %v943 = vadd.f32 %v559, %v879
        %v944 = vadd.f32 %v560, %v880
        %v945 = vadd.f32 %v561, %v881
        %v946 = vadd.f32 %v562, %v882
        %v947 = vadd.f32 %v563, %v883
        %v948 = vadd.f32 %v564, %v884
        %v949 = vadd.f32 %v565, %v885
        %v950 = vadd.f32 %v566, %v886
        %v951 = vadd.f32 %v567, %v887
        %v952 = vadd.f32 %v568, %v888
        %v953 = vadd.f32 %v569, %v889
        %v954 = vadd.f32 %v570, %v890
        %v955 = vadd.f32 %v571, %v891
        %v956 = vadd.f32 %v572, %v892
        %v957 = vadd.f32 %v573, %v893
        %v958 = vadd.f32 %v574, %v894
        %v959 = vadd.f32 %v575, %v895
        %v960 = vadd.f32 %v576, %v896
        %v961 = vadd.f32 %v577, %v897
        %v962 = vadd.f32 %v578, %v898
        %v963 = vadd.f32 %v579, %v899
        %v964 = vadd.f32 %v580, %v900
        %v965 = vadd.f32 %v581, %v901
        %v966 = vadd.f32 %v582, %v902
        %v967 = vadd.f32 %v583, %v903
        %v968 = vadd.f32 %v584, %v904
        %v969 = vadd.f32 %v585, %v905
        %v970 = vadd.f32 %v586, %v906
        %v971 = vadd.f32 %v587, %v907
        %v972 = vadd.f32 %v588, %v908
        %v973 = vadd.f32 %v589, %v909
        %v974 = vadd.f32 %v590, %v910
        %v975 = vadd.f32 %v591, %v911
        %v976 = vadd.f32 %v592, %v912
        %v977 = vadd.f32 %v593, %v913
        %v978 = vadd.f32 %v594, %v914
        %v979 = vadd.f32 %v595, %v915
        %v980 = vadd.f32 %v596, %v916
        %v981 = vadd.f32 %v597, %v917
        %v982 = vadd.f32 %v598, %v918
        %v983 = vadd.f32 %v599, %v919
        %v984 = vadd.f32 %v600, %v920
        %v985 = vadd.f32 %v601, %v921
        %v986 = vadd.f32 %v602, %v922
        %v987 = vadd.f32 %v603, %v923
        %v988 = vadd.f32 %v604, %v924
        %v989 = vadd.s32 %v282, 114
        %v990 = vadd.s32 %v283, 114
        %v991 = vadd.s32 %v284, 114
        %v992 = vadd.s32 %v285, 114
        %v993 = vadd.s32 %v286, 114
        %v994 = vadd.s32 %v287, 114
        %v995 = vadd.s32 %v288, 114
        %v996 = vadd.s32 %v289, 114
        %v997 = vadd.s32 %v290, 114
        %v998 = vadd.s32 %v291, 114
        %v999 = vadd.s32 %v292, 114
        %v1000 = vadd.s32 %v293, 114
        %v1001 = vadd.s32 %v294, 114
        %v1002 = vadd.s32 %v295, 114
        %v1003 = vadd.s32 %v296, 114
        %v1004 = vadd.s32 %v297, 114
        %v1005 = vadd.s32 %v298, 114
        %v1006 = vadd.s32 %v299, 114
        %v1007 = vadd.s32 %v300, 114
        %v1008 = vadd.s32 %v301, 114
        %v1009 = vadd.s32 %v302, 114
        %v1010 = vadd.s32 %v303, 114
        %v1011 = vadd.s32 %v304, 114
        %v1012 = vadd.s32 %v305, 114
        %v1013 = vadd.s32 %v306, 114
        %v1014 = vadd.s32 %v307, 114
        %v1015 = vadd.s32 %v308, 114
        %v1016 = vadd.s32 %v309, 114
        %v1017 = vadd.s32 %v310, 114
        %v1018 = vadd.s32 %v311, 114
        %v1019 = vadd.s32 %v312, 114
        %v1020 = vadd.s32 %v313, 114
        %1021 = vset.pattern.permute.xlu0 2
        %1022 = vperm.xlu0 %1021, %v989
        %v1023 = vpop.permute.xlu0 %1022
        %1024 = vset.pattern.permute.xlu0 2
        %1025 = vperm.xlu0 %1024, %v990
        %v1026 = vpop.permute.xlu0 %1025
        %1027 = vset.pattern.permute.xlu0 2
        %1028 = vperm.xlu0 %1027, %v991
        %v1029 = vpop.permute.xlu0 %1028
        %1030 = vset.pattern.permute.xlu0 2
        %1031 = vperm.xlu0 %1030, %v992
        %v1032 = vpop.permute.xlu0 %1031
        %1033 = vset.pattern.permute.xlu0 2
        %1034 = vperm.xlu0 %1033, %v993
        %v1035 = vpop.permute.xlu0 %1034
        %1036 = vset.pattern.permute.xlu0 2
        %1037 = vperm.xlu0 %1036, %v994
        %v1038 = vpop.permute.xlu0 %1037
        %1039 = vset.pattern.permute.xlu0 2
        %1040 = vperm.xlu0 %1039, %v995
        %v1041 = vpop.permute.xlu0 %1040
        %1042 = vset.pattern.permute.xlu0 2
        %1043 = vperm.xlu0 %1042, %v996
        %v1044 = vpop.permute.xlu0 %1043
        %1045 = vset.pattern.permute.xlu0 2
        %1046 = vperm.xlu0 %1045, %v997
        %v1047 = vpop.permute.xlu0 %1046
        %1048 = vset.pattern.permute.xlu0 2
        %1049 = vperm.xlu0 %1048, %v998
        %v1050 = vpop.permute.xlu0 %1049
        %1051 = vset.pattern.permute.xlu0 2
        %1052 = vperm.xlu0 %1051, %v999
        %v1053 = vpop.permute.xlu0 %1052
        %1054 = vset.pattern.permute.xlu0 2
        %1055 = vperm.xlu0 %1054, %v1000
        %v1056 = vpop.permute.xlu0 %1055
        %1057 = vset.pattern.permute.xlu0 2
        %1058 = vperm.xlu0 %1057, %v1001
        %v1059 = vpop.permute.xlu0 %1058
        %1060 = vset.pattern.permute.xlu0 2
        %1061 = vperm.xlu0 %1060, %v1002
        %v1062 = vpop.permute.xlu0 %1061
        %1063 = vset.pattern.permute.xlu0 2
        %1064 = vperm.xlu0 %1063, %v1003
        %v1065 = vpop.permute.xlu0 %1064
        %1066 = vset.pattern.permute.xlu0 2
        %1067 = vperm.xlu0 %1066, %v1004
        %v1068 = vpop.permute.xlu0 %1067
        %1069 = vset.pattern.permute.xlu0 2
        %1070 = vperm.xlu0 %1069, %v1005
        %v1071 = vpop.permute.xlu0 %1070
        %1072 = vset.pattern.permute.xlu0 2
        %1073 = vperm.xlu0 %1072, %v1006
        %v1074 = vpop.permute.xlu0 %1073
        %1075 = vset.pattern.permute.xlu0 2
        %1076 = vperm.xlu0 %1075, %v1007
        %v1077 = vpop.permute.xlu0 %1076
        %1078 = vset.pattern.permute.xlu0 2
        %1079 = vperm.xlu0 %1078, %v1008
        %v1080 = vpop.permute.xlu0 %1079
        %1081 = vset.pattern.permute.xlu0 2
        %1082 = vperm.xlu0 %1081, %v1009
        %v1083 = vpop.permute.xlu0 %1082
        %1084 = vset.pattern.permute.xlu0 2
        %1085 = vperm.xlu0 %1084, %v1010
        %v1086 = vpop.permute.xlu0 %1085
        %1087 = vset.pattern.permute.xlu0 2
        %1088 = vperm.xlu0 %1087, %v1011
        %v1089 = vpop.permute.xlu0 %1088
        %1090 = vset.pattern.permute.xlu0 2
        %1091 = vperm.xlu0 %1090, %v1012
        %v1092 = vpop.permute.xlu0 %1091
        %1093 = vset.pattern.permute.xlu0 2
        %1094 = vperm.xlu0 %1093, %v1013
        %v1095 = vpop.permute.xlu0 %1094
        %1096 = vset.pattern.permute.xlu0 2
        %1097 = vperm.xlu0 %1096, %v1014
        %v1098 = vpop.permute.xlu0 %1097
        %1099 = vset.pattern.permute.xlu0 2
        %1100 = vperm.xlu0 %1099, %v1015
        %v1101 = vpop.permute.xlu0 %1100
        %1102 = vset.pattern.permute.xlu0 2
        %1103 = vperm.xlu0 %1102, %v1016
        %v1104 = vpop.permute.xlu0 %1103
        %1105 = vset.pattern.permute.xlu0 2
        %1106 = vperm.xlu0 %1105, %v1017
        %v1107 = vpop.permute.xlu0 %1106
        %1108 = vset.pattern.permute.xlu0 2
        %1109 = vperm.xlu0 %1108, %v1018
        %v1110 = vpop.permute.xlu0 %1109
        %1111 = vset.pattern.permute.xlu0 2
        %1112 = vperm.xlu0 %1111, %v1019
        %v1113 = vpop.permute.xlu0 %1112
        %1114 = vset.pattern.permute.xlu0 2
        %1115 = vperm.xlu0 %1114, %v1020
        %v1116 = vpop.permute.xlu0 %1115
        %vm1117 = vcmp.eq.s32.totalorder %v315, %v1023
        %vm1118 = vcmp.eq.s32.totalorder %v316, %v1023
        %vm1119 = vcmp.eq.s32.totalorder %v315, %v1026
        %vm1120 = vcmp.eq.s32.totalorder %v316, %v1026
        %vm1121 = vcmp.eq.s32.totalorder %v315, %v1029
        %vm1122 = vcmp.eq.s32.totalorder %v316, %v1029
        %vm1123 = vcmp.eq.s32.totalorder %v315, %v1032
        %vm1124 = vcmp.eq.s32.totalorder %v316, %v1032
        %vm1125 = vcmp.eq.s32.totalorder %v315, %v1035
        %vm1126 = vcmp.eq.s32.totalorder %v316, %v1035
        %vm1127 = vcmp.eq.s32.totalorder %v315, %v1038
        %vm1128 = vcmp.eq.s32.totalorder %v316, %v1038
        %vm1129 = vcmp.eq.s32.totalorder %v315, %v1041
        %vm1130 = vcmp.eq.s32.totalorder %v316, %v1041
        %vm1131 = vcmp.eq.s32.totalorder %v315, %v1044
        %vm1132 = vcmp.eq.s32.totalorder %v316, %v1044
        %vm1133 = vcmp.eq.s32.totalorder %v315, %v1047
        %vm1134 = vcmp.eq.s32.totalorder %v316, %v1047
        %vm1135 = vcmp.eq.s32.totalorder %v315, %v1050
        %vm1136 = vcmp.eq.s32.totalorder %v316, %v1050
        %vm1137 = vcmp.eq.s32.totalorder %v315, %v1053
        %vm1138 = vcmp.eq.s32.totalorder %v316, %v1053
        %vm1139 = vcmp.eq.s32.totalorder %v315, %v1056
        %vm1140 = vcmp.eq.s32.totalorder %v316, %v1056
        %vm1141 = vcmp.eq.s32.totalorder %v315, %v1059
        %vm1142 = vcmp.eq.s32.totalorder %v316, %v1059
        %vm1143 = vcmp.eq.s32.totalorder %v315, %v1062
        %vm1144 = vcmp.eq.s32.totalorder %v316, %v1062
        %vm1145 = vcmp.eq.s32.totalorder %v315, %v1065
        %vm1146 = vcmp.eq.s32.totalorder %v316, %v1065
        %vm1147 = vcmp.eq.s32.totalorder %v315, %v1068
        %vm1148 = vcmp.eq.s32.totalorder %v316, %v1068
        %vm1149 = vcmp.eq.s32.totalorder %v315, %v1071
        %vm1150 = vcmp.eq.s32.totalorder %v316, %v1071
        %vm1151 = vcmp.eq.s32.totalorder %v315, %v1074
        %vm1152 = vcmp.eq.s32.totalorder %v316, %v1074
        %vm1153 = vcmp.eq.s32.totalorder %v315, %v1077
        %vm1154 = vcmp.eq.s32.totalorder %v316, %v1077
        %vm1155 = vcmp.eq.s32.totalorder %v315, %v1080
        %vm1156 = vcmp.eq.s32.totalorder %v316, %v1080
        %vm1157 = vcmp.eq.s32.totalorder %v315, %v1083
        %vm1158 = vcmp.eq.s32.totalorder %v316, %v1083
        %vm1159 = vcmp.eq.s32.totalorder %v315, %v1086
        %vm1160 = vcmp.eq.s32.totalorder %v316, %v1086
        %vm1161 = vcmp.eq.s32.totalorder %v315, %v1089
        %vm1162 = vcmp.eq.s32.totalorder %v316, %v1089
        %vm1163 = vcmp.eq.s32.totalorder %v315, %v1092
        %vm1164 = vcmp.eq.s32.totalorder %v316, %v1092
        %vm1165 = vcmp.eq.s32.totalorder %v315, %v1095
        %vm1166 = vcmp.eq.s32.totalorder %v316, %v1095
        %vm1167 = vcmp.eq.s32.totalorder %v315, %v1098
        %vm1168 = vcmp.eq.s32.totalorder %v316, %v1098
        %vm1169 = vcmp.eq.s32.totalorder %v315, %v1101
        %vm1170 = vcmp.eq.s32.totalorder %v316, %v1101
        %vm1171 = vcmp.eq.s32.totalorder %v315, %v1104
        %vm1172 = vcmp.eq.s32.totalorder %v316, %v1104
        %vm1173 = vcmp.eq.s32.totalorder %v315, %v1107
        %vm1174 = vcmp.eq.s32.totalorder %v316, %v1107
        %vm1175 = vcmp.eq.s32.totalorder %v315, %v1110
        %vm1176 = vcmp.eq.s32.totalorder %v316, %v1110
        %vm1177 = vcmp.eq.s32.totalorder %v315, %v1113
        %vm1178 = vcmp.eq.s32.totalorder %v316, %v1113
        %vm1179 = vcmp.eq.s32.totalorder %v315, %v1116
        %vm1180 = vcmp.eq.s32.totalorder %v316, %v1116
        %v1181 = vsel %vm1117, 1, 0
        %v1182 = vsel %vm1118, 1, 0
        %v1183 = vsel %vm1119, 1, 0
        %v1184 = vsel %vm1120, 1, 0
        %v1185 = vsel %vm1121, 1, 0
        %v1186 = vsel %vm1122, 1, 0
        %v1187 = vsel %vm1123, 1, 0
        %v1188 = vsel %vm1124, 1, 0
        %v1189 = vsel %vm1125, 1, 0
        %v1190 = vsel %vm1126, 1, 0
        %v1191 = vsel %vm1127, 1, 0
        %v1192 = vsel %vm1128, 1, 0
        %v1193 = vsel %vm1129, 1, 0
        %v1194 = vsel %vm1130, 1, 0
        %v1195 = vsel %vm1131, 1, 0
        %v1196 = vsel %vm1132, 1, 0
        %v1197 = vsel %vm1133, 1, 0
        %v1198 = vsel %vm1134, 1, 0
        %v1199 = vsel %vm1135, 1, 0
        %v1200 = vsel %vm1136, 1, 0
        %v1201 = vsel %vm1137, 1, 0
        %v1202 = vsel %vm1138, 1, 0
        %v1203 = vsel %vm1139, 1, 0
        %v1204 = vsel %vm1140, 1, 0
        %v1205 = vsel %vm1141, 1, 0
        %v1206 = vsel %vm1142, 1, 0
        %v1207 = vsel %vm1143, 1, 0
        %v1208 = vsel %vm1144, 1, 0
        %v1209 = vsel %vm1145, 1, 0
        %v1210 = vsel %vm1146, 1, 0
        %v1211 = vsel %vm1147, 1, 0
        %v1212 = vsel %vm1148, 1, 0
        %v1213 = vsel %vm1149, 1, 0
        %v1214 = vsel %vm1150, 1, 0
        %v1215 = vsel %vm1151, 1, 0
        %v1216 = vsel %vm1152, 1, 0
        %v1217 = vsel %vm1153, 1, 0
        %v1218 = vsel %vm1154, 1, 0
        %v1219 = vsel %vm1155, 1, 0
        %v1220 = vsel %vm1156, 1, 0
        %v1221 = vsel %vm1157, 1, 0
        %v1222 = vsel %vm1158, 1, 0
        %v1223 = vsel %vm1159, 1, 0
        %v1224 = vsel %vm1160, 1, 0
        %v1225 = vsel %vm1161, 1, 0
        %v1226 = vsel %vm1162, 1, 0
        %v1227 = vsel %vm1163, 1, 0
        %v1228 = vsel %vm1164, 1, 0
        %v1229 = vsel %vm1165, 1, 0
        %v1230 = vsel %vm1166, 1, 0
        %v1231 = vsel %vm1167, 1, 0
        %v1232 = vsel %vm1168, 1, 0
        %v1233 = vsel %vm1169, 1, 0
        %v1234 = vsel %vm1170, 1, 0
        %v1235 = vsel %vm1171, 1, 0
        %v1236 = vsel %vm1172, 1, 0
        %v1237 = vsel %vm1173, 1, 0
        %v1238 = vsel %vm1174, 1, 0
        %v1239 = vsel %vm1175, 1, 0
        %v1240 = vsel %vm1176, 1, 0
        %v1241 = vsel %vm1177, 1, 0
        %v1242 = vsel %vm1178, 1, 0
        %v1243 = vsel %vm1179, 1, 0
        %v1244 = vsel %vm1180, 1, 0
        %v1245 = vcvt.s32.f32 %v1181
        %v1246 = vcvt.s32.f32 %v1182
        %v1247 = vcvt.s32.f32 %v1183
        %v1248 = vcvt.s32.f32 %v1184
        %v1249 = vcvt.s32.f32 %v1185
        %v1250 = vcvt.s32.f32 %v1186
        %v1251 = vcvt.s32.f32 %v1187
        %v1252 = vcvt.s32.f32 %v1188
        %v1253 = vcvt.s32.f32 %v1189
        %v1254 = vcvt.s32.f32 %v1190
        %v1255 = vcvt.s32.f32 %v1191
        %v1256 = vcvt.s32.f32 %v1192
        %v1257 = vcvt.s32.f32 %v1193
        %v1258 = vcvt.s32.f32 %v1194
        %v1259 = vcvt.s32.f32 %v1195
        %v1260 = vcvt.s32.f32 %v1196
        %v1261 = vcvt.s32.f32 %v1197
        %v1262 = vcvt.s32.f32 %v1198
        %v1263 = vcvt.s32.f32 %v1199
        %v1264 = vcvt.s32.f32 %v1200
        %v1265 = vcvt.s32.f32 %v1201
        %v1266 = vcvt.s32.f32 %v1202
        %v1267 = vcvt.s32.f32 %v1203
        %v1268 = vcvt.s32.f32 %v1204
        %v1269 = vcvt.s32.f32 %v1205
        %v1270 = vcvt.s32.f32 %v1206
        %v1271 = vcvt.s32.f32 %v1207
        %v1272 = vcvt.s32.f32 %v1208
        %v1273 = vcvt.s32.f32 %v1209
        %v1274 = vcvt.s32.f32 %v1210
        %v1275 = vcvt.s32.f32 %v1211
        %v1276 = vcvt.s32.f32 %v1212
        %v1277 = vcvt.s32.f32 %v1213
        %v1278 = vcvt.s32.f32 %v1214
        %v1279 = vcvt.s32.f32 %v1215
        %v1280 = vcvt.s32.f32 %v1216
        %v1281 = vcvt.s32.f32 %v1217
        %v1282 = vcvt.s32.f32 %v1218
        %v1283 = vcvt.s32.f32 %v1219
        %v1284 = vcvt.s32.f32 %v1220
        %v1285 = vcvt.s32.f32 %v1221
        %v1286 = vcvt.s32.f32 %v1222
        %v1287 = vcvt.s32.f32 %v1223
        %v1288 = vcvt.s32.f32 %v1224
        %v1289 = vcvt.s32.f32 %v1225
        %v1290 = vcvt.s32.f32 %v1226
        %v1291 = vcvt.s32.f32 %v1227
        %v1292 = vcvt.s32.f32 %v1228
        %v1293 = vcvt.s32.f32 %v1229
        %v1294 = vcvt.s32.f32 %v1230
        %v1295 = vcvt.s32.f32 %v1231
        %v1296 = vcvt.s32.f32 %v1232
        %v1297 = vcvt.s32.f32 %v1233
        %v1298 = vcvt.s32.f32 %v1234
        %v1299 = vcvt.s32.f32 %v1235
        %v1300 = vcvt.s32.f32 %v1236
        %v1301 = vcvt.s32.f32 %v1237
        %v1302 = vcvt.s32.f32 %v1238
        %v1303 = vcvt.s32.f32 %v1239
        %v1304 = vcvt.s32.f32 %v1240
        %v1305 = vcvt.s32.f32 %v1241
        %v1306 = vcvt.s32.f32 %v1242
        %v1307 = vcvt.s32.f32 %v1243
        %v1308 = vcvt.s32.f32 %v1244
        %v1309 = vadd.f32 %v925, %v1245
        %v1310 = vadd.f32 %v926, %v1246
        %v1311 = vadd.f32 %v927, %v1247
        %v1312 = vadd.f32 %v928, %v1248
        %v1313 = vadd.f32 %v929, %v1249
        %v1314 = vadd.f32 %v930, %v1250
        %v1315 = vadd.f32 %v931, %v1251
        %v1316 = vadd.f32 %v932, %v1252
        %v1317 = vadd.f32 %v933, %v1253
        %v1318 = vadd.f32 %v934, %v1254
        %v1319 = vadd.f32 %v935, %v1255
        %v1320 = vadd.f32 %v936, %v1256
        %v1321 = vadd.f32 %v937, %v1257
        %v1322 = vadd.f32 %v938, %v1258
        %v1323 = vadd.f32 %v939, %v1259
        %v1324 = vadd.f32 %v940, %v1260
        %v1325 = vadd.f32 %v941, %v1261
        %v1326 = vadd.f32 %v942, %v1262
        %v1327 = vadd.f32 %v943, %v1263
        %v1328 = vadd.f32 %v944, %v1264
        %v1329 = vadd.f32 %v945, %v1265
        %v1330 = vadd.f32 %v946, %v1266
        %v1331 = vadd.f32 %v947, %v1267
        %v1332 = vadd.f32 %v948, %v1268
        %v1333 = vadd.f32 %v949, %v1269
        %v1334 = vadd.f32 %v950, %v1270
        %v1335 = vadd.f32 %v951, %v1271
        %v1336 = vadd.f32 %v952, %v1272
        %v1337 = vadd.f32 %v953, %v1273
        %v1338 = vadd.f32 %v954, %v1274
        %v1339 = vadd.f32 %v955, %v1275
        %v1340 = vadd.f32 %v956, %v1276
        %v1341 = vadd.f32 %v957, %v1277
        %v1342 = vadd.f32 %v958, %v1278
        %v1343 = vadd.f32 %v959, %v1279
        %v1344 = vadd.f32 %v960, %v1280
        %v1345 = vadd.f32 %v961, %v1281
        %v1346 = vadd.f32 %v962, %v1282
        %v1347 = vadd.f32 %v963, %v1283
        %v1348 = vadd.f32 %v964, %v1284
        %v1349 = vadd.f32 %v965, %v1285
        %v1350 = vadd.f32 %v966, %v1286
        %v1351 = vadd.f32 %v967, %v1287
        %v1352 = vadd.f32 %v968, %v1288
        %v1353 = vadd.f32 %v969, %v1289
        %v1354 = vadd.f32 %v970, %v1290
        %v1355 = vadd.f32 %v971, %v1291
        %v1356 = vadd.f32 %v972, %v1292
        %v1357 = vadd.f32 %v973, %v1293
        %v1358 = vadd.f32 %v974, %v1294
        %v1359 = vadd.f32 %v975, %v1295
        %v1360 = vadd.f32 %v976, %v1296
        %v1361 = vadd.f32 %v977, %v1297
        %v1362 = vadd.f32 %v978, %v1298
        %v1363 = vadd.f32 %v979, %v1299
        %v1364 = vadd.f32 %v980, %v1300
        %v1365 = vadd.f32 %v981, %v1301
        %v1366 = vadd.f32 %v982, %v1302
        %v1367 = vadd.f32 %v983, %v1303
        %v1368 = vadd.f32 %v984, %v1304
        %v1369 = vadd.f32 %v985, %v1305
        %v1370 = vadd.f32 %v986, %v1306
        %v1371 = vadd.f32 %v987, %v1307
        %v1372 = vadd.f32 %v988, %v1308
        %v1373 = vadd.s32 %v282, 175
        %v1374 = vadd.s32 %v283, 175
        %v1375 = vadd.s32 %v284, 175
        %v1376 = vadd.s32 %v285, 175
        %v1377 = vadd.s32 %v286, 175
        %v1378 = vadd.s32 %v287, 175
        %v1379 = vadd.s32 %v288, 175
        %v1380 = vadd.s32 %v289, 175
        %v1381 = vadd.s32 %v290, 175
        %v1382 = vadd.s32 %v291, 175
        %v1383 = vadd.s32 %v292, 175
        %v1384 = vadd.s32 %v293, 175
        %v1385 = vadd.s32 %v294, 175
        %v1386 = vadd.s32 %v295, 175
        %v1387 = vadd.s32 %v296, 175
        %v1388 = vadd.s32 %v297, 175
        %v1389 = vadd.s32 %v298, 175
        %v1390 = vadd.s32 %v299, 175
        %v1391 = vadd.s32 %v300, 175
        %v1392 = vadd.s32 %v301, 175
        %v1393 = vadd.s32 %v302, 175
        %v1394 = vadd.s32 %v303, 175
        %v1395 = vadd.s32 %v304, 175
        %v1396 = vadd.s32 %v305, 175
        %v1397 = vadd.s32 %v306, 175
        %v1398 = vadd.s32 %v307, 175
        %v1399 = vadd.s32 %v308, 175
        %v1400 = vadd.s32 %v309, 175
        %v1401 = vadd.s32 %v310, 175
        %v1402 = vadd.s32 %v311, 175
        %v1403 = vadd.s32 %v312, 175
        %v1404 = vadd.s32 %v313, 175
        %1405 = vset.pattern.permute.xlu0 3
        %1406 = vperm.xlu0 %1405, %v1373
        %v1407 = vpop.permute.xlu0 %1406
        %1408 = vset.pattern.permute.xlu0 3
        %1409 = vperm.xlu0 %1408, %v1374
        %v1410 = vpop.permute.xlu0 %1409
        %1411 = vset.pattern.permute.xlu0 3
        %1412 = vperm.xlu0 %1411, %v1375
        %v1413 = vpop.permute.xlu0 %1412
        %1414 = vset.pattern.permute.xlu0 3
        %1415 = vperm.xlu0 %1414, %v1376
        %v1416 = vpop.permute.xlu0 %1415
        %1417 = vset.pattern.permute.xlu0 3
        %1418 = vperm.xlu0 %1417, %v1377
        %v1419 = vpop.permute.xlu0 %1418
        %1420 = vset.pattern.permute.xlu0 3
        %1421 = vperm.xlu0 %1420, %v1378
        %v1422 = vpop.permute.xlu0 %1421
        %1423 = vset.pattern.permute.xlu0 3
        %1424 = vperm.xlu0 %1423, %v1379
        %v1425 = vpop.permute.xlu0 %1424
        %1426 = vset.pattern.permute.xlu0 3
        %1427 = vperm.xlu0 %1426, %v1380
        %v1428 = vpop.permute.xlu0 %1427
        %1429 = vset.pattern.permute.xlu0 3
        %1430 = vperm.xlu0 %1429, %v1381
        %v1431 = vpop.permute.xlu0 %1430
        %1432 = vset.pattern.permute.xlu0 3
        %1433 = vperm.xlu0 %1432, %v1382
        %v1434 = vpop.permute.xlu0 %1433
        %1435 = vset.pattern.permute.xlu0 3
        %1436 = vperm.xlu0 %1435, %v1383
        %v1437 = vpop.permute.xlu0 %1436
        %1438 = vset.pattern.permute.xlu0 3
        %1439 = vperm.xlu0 %1438, %v1384
        %v1440 = vpop.permute.xlu0 %1439
        %1441 = vset.pattern.permute.xlu0 3
        %1442 = vperm.xlu0 %1441, %v1385
        %v1443 = vpop.permute.xlu0 %1442
        %1444 = vset.pattern.permute.xlu0 3
        %1445 = vperm.xlu0 %1444, %v1386
        %v1446 = vpop.permute.xlu0 %1445
        %1447 = vset.pattern.permute.xlu0 3
        %1448 = vperm.xlu0 %1447, %v1387
        %v1449 = vpop.permute.xlu0 %1448
        %1450 = vset.pattern.permute.xlu0 3
        %1451 = vperm.xlu0 %1450, %v1388
        %v1452 = vpop.permute.xlu0 %1451
        %1453 = vset.pattern.permute.xlu0 3
        %1454 = vperm.xlu0 %1453, %v1389
        %v1455 = vpop.permute.xlu0 %1454
        %1456 = vset.pattern.permute.xlu0 3
        %1457 = vperm.xlu0 %1456, %v1390
        %v1458 = vpop.permute.xlu0 %1457
        %1459 = vset.pattern.permute.xlu0 3
        %1460 = vperm.xlu0 %1459, %v1391
        %v1461 = vpop.permute.xlu0 %1460
        %1462 = vset.pattern.permute.xlu0 3
        %1463 = vperm.xlu0 %1462, %v1392
        %v1464 = vpop.permute.xlu0 %1463
        %1465 = vset.pattern.permute.xlu0 3
        %1466 = vperm.xlu0 %1465, %v1393
        %v1467 = vpop.permute.xlu0 %1466
        %1468 = vset.pattern.permute.xlu0 3
        %1469 = vperm.xlu0 %1468, %v1394
        %v1470 = vpop.permute.xlu0 %1469
        %1471 = vset.pattern.permute.xlu0 3
        %1472 = vperm.xlu0 %1471, %v1395
        %v1473 = vpop.permute.xlu0 %1472
        %1474 = vset.pattern.permute.xlu0 3
        %1475 = vperm.xlu0 %1474, %v1396
        %v1476 = vpop.permute.xlu0 %1475
        %1477 = vset.pattern.permute.xlu0 3
        %1478 = vperm.xlu0 %1477, %v1397
        %v1479 = vpop.permute.xlu0 %1478
        %1480 = vset.pattern.permute.xlu0 3
        %1481 = vperm.xlu0 %1480, %v1398
        %v1482 = vpop.permute.xlu0 %1481
        %1483 = vset.pattern.permute.xlu0 3
        %1484 = vperm.xlu0 %1483, %v1399
        %v1485 = vpop.permute.xlu0 %1484
        %1486 = vset.pattern.permute.xlu0 3
        %1487 = vperm.xlu0 %1486, %v1400
        %v1488 = vpop.permute.xlu0 %1487
        %1489 = vset.pattern.permute.xlu0 3
        %1490 = vperm.xlu0 %1489, %v1401
        %v1491 = vpop.permute.xlu0 %1490
        %1492 = vset.pattern.permute.xlu0 3
        %1493 = vperm.xlu0 %1492, %v1402
        %v1494 = vpop.permute.xlu0 %1493
        %1495 = vset.pattern.permute.xlu0 3
        %1496 = vperm.xlu0 %1495, %v1403
        %v1497 = vpop.permute.xlu0 %1496
        %1498 = vset.pattern.permute.xlu0 3
        %1499 = vperm.xlu0 %1498, %v1404
        %v1500 = vpop.permute.xlu0 %1499
        %vm1501 = vcmp.eq.s32.totalorder %v315, %v1407
        %vm1502 = vcmp.eq.s32.totalorder %v316, %v1407
        %vm1503 = vcmp.eq.s32.totalorder %v315, %v1410
        %vm1504 = vcmp.eq.s32.totalorder %v316, %v1410
        %vm1505 = vcmp.eq.s32.totalorder %v315, %v1413
        %vm1506 = vcmp.eq.s32.totalorder %v316, %v1413
        %vm1507 = vcmp.eq.s32.totalorder %v315, %v1416
        %vm1508 = vcmp.eq.s32.totalorder %v316, %v1416
        %vm1509 = vcmp.eq.s32.totalorder %v315, %v1419
        %vm1510 = vcmp.eq.s32.totalorder %v316, %v1419
        %vm1511 = vcmp.eq.s32.totalorder %v315, %v1422
        %vm1512 = vcmp.eq.s32.totalorder %v316, %v1422
        %vm1513 = vcmp.eq.s32.totalorder %v315, %v1425
        %vm1514 = vcmp.eq.s32.totalorder %v316, %v1425
        %vm1515 = vcmp.eq.s32.totalorder %v315, %v1428
        %vm1516 = vcmp.eq.s32.totalorder %v316, %v1428
        %vm1517 = vcmp.eq.s32.totalorder %v315, %v1431
        %vm1518 = vcmp.eq.s32.totalorder %v316, %v1431
        %vm1519 = vcmp.eq.s32.totalorder %v315, %v1434
        %vm1520 = vcmp.eq.s32.totalorder %v316, %v1434
        %vm1521 = vcmp.eq.s32.totalorder %v315, %v1437
        %vm1522 = vcmp.eq.s32.totalorder %v316, %v1437
        %vm1523 = vcmp.eq.s32.totalorder %v315, %v1440
        %vm1524 = vcmp.eq.s32.totalorder %v316, %v1440
        %vm1525 = vcmp.eq.s32.totalorder %v315, %v1443
        %vm1526 = vcmp.eq.s32.totalorder %v316, %v1443
        %vm1527 = vcmp.eq.s32.totalorder %v315, %v1446
        %vm1528 = vcmp.eq.s32.totalorder %v316, %v1446
        %vm1529 = vcmp.eq.s32.totalorder %v315, %v1449
        %vm1530 = vcmp.eq.s32.totalorder %v316, %v1449
        %vm1531 = vcmp.eq.s32.totalorder %v315, %v1452
        %vm1532 = vcmp.eq.s32.totalorder %v316, %v1452
        %vm1533 = vcmp.eq.s32.totalorder %v315, %v1455
        %vm1534 = vcmp.eq.s32.totalorder %v316, %v1455
        %vm1535 = vcmp.eq.s32.totalorder %v315, %v1458
        %vm1536 = vcmp.eq.s32.totalorder %v316, %v1458
        %vm1537 = vcmp.eq.s32.totalorder %v315, %v1461
        %vm1538 = vcmp.eq.s32.totalorder %v316, %v1461
        %vm1539 = vcmp.eq.s32.totalorder %v315, %v1464
        %vm1540 = vcmp.eq.s32.totalorder %v316, %v1464
        %vm1541 = vcmp.eq.s32.totalorder %v315, %v1467
        %vm1542 = vcmp.eq.s32.totalorder %v316, %v1467
        %vm1543 = vcmp.eq.s32.totalorder %v315, %v1470
        %vm1544 = vcmp.eq.s32.totalorder %v316, %v1470
        %vm1545 = vcmp.eq.s32.totalorder %v315, %v1473
        %vm1546 = vcmp.eq.s32.totalorder %v316, %v1473
        %vm1547 = vcmp.eq.s32.totalorder %v315, %v1476
        %vm1548 = vcmp.eq.s32.totalorder %v316, %v1476
        %vm1549 = vcmp.eq.s32.totalorder %v315, %v1479
        %vm1550 = vcmp.eq.s32.totalorder %v316, %v1479
        %vm1551 = vcmp.eq.s32.totalorder %v315, %v1482
        %vm1552 = vcmp.eq.s32.totalorder %v316, %v1482
        %vm1553 = vcmp.eq.s32.totalorder %v315, %v1485
        %vm1554 = vcmp.eq.s32.totalorder %v316, %v1485
        %vm1555 = vcmp.eq.s32.totalorder %v315, %v1488
        %vm1556 = vcmp.eq.s32.totalorder %v316, %v1488
        %vm1557 = vcmp.eq.s32.totalorder %v315, %v1491
        %vm1558 = vcmp.eq.s32.totalorder %v316, %v1491
        %vm1559 = vcmp.eq.s32.totalorder %v315, %v1494
        %vm1560 = vcmp.eq.s32.totalorder %v316, %v1494
        %vm1561 = vcmp.eq.s32.totalorder %v315, %v1497
        %vm1562 = vcmp.eq.s32.totalorder %v316, %v1497
        %vm1563 = vcmp.eq.s32.totalorder %v315, %v1500
        %vm1564 = vcmp.eq.s32.totalorder %v316, %v1500
        %v1565 = vsel %vm1501, 1, 0
        %v1566 = vsel %vm1502, 1, 0
        %v1567 = vsel %vm1503, 1, 0
        %v1568 = vsel %vm1504, 1, 0
        %v1569 = vsel %vm1505, 1, 0
        %v1570 = vsel %vm1506, 1, 0
        %v1571 = vsel %vm1507, 1, 0
        %v1572 = vsel %vm1508, 1, 0
        %v1573 = vsel %vm1509, 1, 0
        %v1574 = vsel %vm1510, 1, 0
        %v1575 = vsel %vm1511, 1, 0
        %v1576 = vsel %vm1512, 1, 0
        %v1577 = vsel %vm1513, 1, 0
        %v1578 = vsel %vm1514, 1, 0
        %v1579 = vsel %vm1515, 1, 0
        %v1580 = vsel %vm1516, 1, 0
        %v1581 = vsel %vm1517, 1, 0
        %v1582 = vsel %vm1518, 1, 0
        %v1583 = vsel %vm1519, 1, 0
        %v1584 = vsel %vm1520, 1, 0
        %v1585 = vsel %vm1521, 1, 0
        %v1586 = vsel %vm1522, 1, 0
        %v1587 = vsel %vm1523, 1, 0
        %v1588 = vsel %vm1524, 1, 0
        %v1589 = vsel %vm1525, 1, 0
        %v1590 = vsel %vm1526, 1, 0
        %v1591 = vsel %vm1527, 1, 0
        %v1592 = vsel %vm1528, 1, 0
        %v1593 = vsel %vm1529, 1, 0
        %v1594 = vsel %vm1530, 1, 0
        %v1595 = vsel %vm1531, 1, 0
        %v1596 = vsel %vm1532, 1, 0
        %v1597 = vsel %vm1533, 1, 0
        %v1598 = vsel %vm1534, 1, 0
        %v1599 = vsel %vm1535, 1, 0
        %v1600 = vsel %vm1536, 1, 0
        %v1601 = vsel %vm1537, 1, 0
        %v1602 = vsel %vm1538, 1, 0
        %v1603 = vsel %vm1539, 1, 0
        %v1604 = vsel %vm1540, 1, 0
        %v1605 = vsel %vm1541, 1, 0
        %v1606 = vsel %vm1542, 1, 0
        %v1607 = vsel %vm1543, 1, 0
        %v1608 = vsel %vm1544, 1, 0
        %v1609 = vsel %vm1545, 1, 0
        %v1610 = vsel %vm1546, 1, 0
        %v1611 = vsel %vm1547, 1, 0
        %v1612 = vsel %vm1548, 1, 0
        %v1613 = vsel %vm1549, 1, 0
        %v1614 = vsel %vm1550, 1, 0
        %v1615 = vsel %vm1551, 1, 0
        %v1616 = vsel %vm1552, 1, 0
        %v1617 = vsel %vm1553, 1, 0
        %v1618 = vsel %vm1554, 1, 0
        %v1619 = vsel %vm1555, 1, 0
        %v1620 = vsel %vm1556, 1, 0
        %v1621 = vsel %vm1557, 1, 0
        %v1622 = vsel %vm1558, 1, 0
        %v1623 = vsel %vm1559, 1, 0
        %v1624 = vsel %vm1560, 1, 0
        %v1625 = vsel %vm1561, 1, 0
        %v1626 = vsel %vm1562, 1, 0
        %v1627 = vsel %vm1563, 1, 0
        %v1628 = vsel %vm1564, 1, 0
        %v1629 = vcvt.s32.f32 %v1565
        %v1630 = vcvt.s32.f32 %v1566
        %v1631 = vcvt.s32.f32 %v1567
        %v1632 = vcvt.s32.f32 %v1568
        %v1633 = vcvt.s32.f32 %v1569
        %v1634 = vcvt.s32.f32 %v1570
        %v1635 = vcvt.s32.f32 %v1571
        %v1636 = vcvt.s32.f32 %v1572
        %v1637 = vcvt.s32.f32 %v1573
        %v1638 = vcvt.s32.f32 %v1574
        %v1639 = vcvt.s32.f32 %v1575
        %v1640 = vcvt.s32.f32 %v1576
        %v1641 = vcvt.s32.f32 %v1577
        %v1642 = vcvt.s32.f32 %v1578
        %v1643 = vcvt.s32.f32 %v1579
        %v1644 = vcvt.s32.f32 %v1580
        %v1645 = vcvt.s32.f32 %v1581
        %v1646 = vcvt.s32.f32 %v1582
        %v1647 = vcvt.s32.f32 %v1583
        %v1648 = vcvt.s32.f32 %v1584
        %v1649 = vcvt.s32.f32 %v1585
        %v1650 = vcvt.s32.f32 %v1586
        %v1651 = vcvt.s32.f32 %v1587
        %v1652 = vcvt.s32.f32 %v1588
        %v1653 = vcvt.s32.f32 %v1589
        %v1654 = vcvt.s32.f32 %v1590
        %v1655 = vcvt.s32.f32 %v1591
        %v1656 = vcvt.s32.f32 %v1592
        %v1657 = vcvt.s32.f32 %v1593
        %v1658 = vcvt.s32.f32 %v1594
        %v1659 = vcvt.s32.f32 %v1595
        %v1660 = vcvt.s32.f32 %v1596
        %v1661 = vcvt.s32.f32 %v1597
        %v1662 = vcvt.s32.f32 %v1598
        %v1663 = vcvt.s32.f32 %v1599
        %v1664 = vcvt.s32.f32 %v1600
        %v1665 = vcvt.s32.f32 %v1601
        %v1666 = vcvt.s32.f32 %v1602
        %v1667 = vcvt.s32.f32 %v1603
        %v1668 = vcvt.s32.f32 %v1604
        %v1669 = vcvt.s32.f32 %v1605
        %v1670 = vcvt.s32.f32 %v1606
        %v1671 = vcvt.s32.f32 %v1607
        %v1672 = vcvt.s32.f32 %v1608
        %v1673 = vcvt.s32.f32 %v1609
        %v1674 = vcvt.s32.f32 %v1610
        %v1675 = vcvt.s32.f32 %v1611
        %v1676 = vcvt.s32.f32 %v1612
        %v1677 = vcvt.s32.f32 %v1613
        %v1678 = vcvt.s32.f32 %v1614
        %v1679 = vcvt.s32.f32 %v1615
        %v1680 = vcvt.s32.f32 %v1616
        %v1681 = vcvt.s32.f32 %v1617
        %v1682 = vcvt.s32.f32 %v1618
        %v1683 = vcvt.s32.f32 %v1619
        %v1684 = vcvt.s32.f32 %v1620
        %v1685 = vcvt.s32.f32 %v1621
        %v1686 = vcvt.s32.f32 %v1622
        %v1687 = vcvt.s32.f32 %v1623
        %v1688 = vcvt.s32.f32 %v1624
        %v1689 = vcvt.s32.f32 %v1625
        %v1690 = vcvt.s32.f32 %v1626
        %v1691 = vcvt.s32.f32 %v1627
        %v1692 = vcvt.s32.f32 %v1628
        %v1693 = vadd.f32 %v1309, %v1629
        %v1694 = vadd.f32 %v1310, %v1630
        %v1695 = vadd.f32 %v1311, %v1631
        %v1696 = vadd.f32 %v1312, %v1632
        %v1697 = vadd.f32 %v1313, %v1633
        %v1698 = vadd.f32 %v1314, %v1634
        %v1699 = vadd.f32 %v1315, %v1635
        %v1700 = vadd.f32 %v1316, %v1636
        %v1701 = vadd.f32 %v1317, %v1637
        %v1702 = vadd.f32 %v1318, %v1638
        %v1703 = vadd.f32 %v1319, %v1639
        %v1704 = vadd.f32 %v1320, %v1640
        %v1705 = vadd.f32 %v1321, %v1641
        %v1706 = vadd.f32 %v1322, %v1642
        %v1707 = vadd.f32 %v1323, %v1643
        %v1708 = vadd.f32 %v1324, %v1644
        %v1709 = vadd.f32 %v1325, %v1645
        %v1710 = vadd.f32 %v1326, %v1646
        %v1711 = vadd.f32 %v1327, %v1647
        %v1712 = vadd.f32 %v1328, %v1648
        %v1713 = vadd.f32 %v1329, %v1649
        %v1714 = vadd.f32 %v1330, %v1650
        %v1715 = vadd.f32 %v1331, %v1651
        %v1716 = vadd.f32 %v1332, %v1652
        %v1717 = vadd.f32 %v1333, %v1653
        %v1718 = vadd.f32 %v1334, %v1654
        %v1719 = vadd.f32 %v1335, %v1655
        %v1720 = vadd.f32 %v1336, %v1656
        %v1721 = vadd.f32 %v1337, %v1657
        %v1722 = vadd.f32 %v1338, %v1658
        %v1723 = vadd.f32 %v1339, %v1659
        %v1724 = vadd.f32 %v1340, %v1660
        %v1725 = vadd.f32 %v1341, %v1661
        %v1726 = vadd.f32 %v1342, %v1662
        %v1727 = vadd.f32 %v1343, %v1663
        %v1728 = vadd.f32 %v1344, %v1664
        %v1729 = vadd.f32 %v1345, %v1665
        %v1730 = vadd.f32 %v1346, %v1666
        %v1731 = vadd.f32 %v1347, %v1667
        %v1732 = vadd.f32 %v1348, %v1668
        %v1733 = vadd.f32 %v1349, %v1669
        %v1734 = vadd.f32 %v1350, %v1670
        %v1735 = vadd.f32 %v1351, %v1671
        %v1736 = vadd.f32 %v1352, %v1672
        %v1737 = vadd.f32 %v1353, %v1673
        %v1738 = vadd.f32 %v1354, %v1674
        %v1739 = vadd.f32 %v1355, %v1675
        %v1740 = vadd.f32 %v1356, %v1676
        %v1741 = vadd.f32 %v1357, %v1677
        %v1742 = vadd.f32 %v1358, %v1678
        %v1743 = vadd.f32 %v1359, %v1679
        %v1744 = vadd.f32 %v1360, %v1680
        %v1745 = vadd.f32 %v1361, %v1681
        %v1746 = vadd.f32 %v1362, %v1682
        %v1747 = vadd.f32 %v1363, %v1683
        %v1748 = vadd.f32 %v1364, %v1684
        %v1749 = vadd.f32 %v1365, %v1685
        %v1750 = vadd.f32 %v1366, %v1686
        %v1751 = vadd.f32 %v1367, %v1687
        %v1752 = vadd.f32 %v1368, %v1688
        %v1753 = vadd.f32 %v1369, %v1689
        %v1754 = vadd.f32 %v1370, %v1690
        %v1755 = vadd.f32 %v1371, %v1691
        %v1756 = vadd.f32 %v1372, %v1692
        %v1757 = vld [vmem:[%s1] sm:$0xff]
        %v1758 = vld [vmem:[%s1 + $0x8] sm:$0xff]
        %v1759 = vld [vmem:[%s1 + $0x10] sm:$0xff]
        %v1760 = vld [vmem:[%s1 + $0x18] sm:$0xff]
        %v1761 = vld [vmem:[%s1 + $0x20] sm:$0xff]
        %v1762 = vld [vmem:[%s1 + $0x28] sm:$0xff]
        %v1763 = vld [vmem:[%s1 + $0x30] sm:$0xff]
        %v1764 = vld [vmem:[%s1 + $0x38] sm:$0xff]
        %v1765 = vld [vmem:[%s1 + $0x40] sm:$0xff]
        %v1766 = vld [vmem:[%s1 + $0x48] sm:$0xff]
        %v1767 = vld [vmem:[%s1 + $0x50] sm:$0xff]
        %v1768 = vld [vmem:[%s1 + $0x58] sm:$0xff]
        %v1769 = vld [vmem:[%s1 + $0x60] sm:$0xff]
        %v1770 = vld [vmem:[%s1 + $0x68] sm:$0xff]
        %v1771 = vld [vmem:[%s1 + $0x70] sm:$0xff]
        %v1772 = vld [vmem:[%s1 + $0x78] sm:$0xff]
        %v1773 = vld [vmem:[%s1 + $0x80] sm:$0xff]
        %v1774 = vld [vmem:[%s1 + $0x88] sm:$0xff]
        %v1775 = vld [vmem:[%s1 + $0x90] sm:$0xff]
        %v1776 = vld [vmem:[%s1 + $0x98] sm:$0xff]
        %v1777 = vld [vmem:[%s1 + $0xa0] sm:$0xff]
        %v1778 = vld [vmem:[%s1 + $0xa8] sm:$0xff]
        %v1779 = vld [vmem:[%s1 + $0xb0] sm:$0xff]
        %v1780 = vld [vmem:[%s1 + $0xb8] sm:$0xff]
        %v1781 = vld [vmem:[%s3] sm:$0x1]
        %v1783 = vperm.slane %v1781, 0
        %vm1785 = vcmask 523264
        %v1787 = vsel %vm1785, %v1694, 0
        %v1790 = vsel %vm1785, %v1696, 0
        %v1793 = vsel %vm1785, %v1698, 0
        %v1796 = vsel %vm1785, %v1700, 0
        %v1799 = vsel %vm1785, %v1702, 0
        %v1802 = vsel %vm1785, %v1704, 0
        %v1805 = vsel %vm1785, %v1706, 0
        %v1808 = vsel %vm1785, %v1708, 0
        %v1811 = vsel %vm1785, %v1710, 0
        %v1814 = vsel %vm1785, %v1712, 0
        %v1817 = vsel %vm1785, %v1714, 0
        %v1820 = vsel %vm1785, %v1716, 0
        %v1823 = vsel %vm1785, %v1718, 0
        %v1826 = vsel %vm1785, %v1720, 0
        %v1829 = vsel %vm1785, %v1722, 0
        %v1832 = vsel %vm1785, %v1724, 0
        %v1835 = vsel %vm1785, %v1726, 0
        %v1838 = vsel %vm1785, %v1728, 0
        %v1841 = vsel %vm1785, %v1730, 0
        %v1844 = vsel %vm1785, %v1732, 0
        %v1847 = vsel %vm1785, %v1734, 0
        %v1850 = vsel %vm1785, %v1736, 0
        %v1853 = vsel %vm1785, %v1738, 0
        %v1856 = vsel %vm1785, %v1740, 0
        %v1859 = vsel %vm1785, %v1742, 0
        %v1862 = vsel %vm1785, %v1744, 0
        %v1865 = vsel %vm1785, %v1746, 0
        %v1868 = vsel %vm1785, %v1748, 0
        %v1871 = vsel %vm1785, %v1750, 0
        %v1874 = vsel %vm1785, %v1752, 0
        %v1877 = vsel %vm1785, %v1754, 0
        %v1880 = vsel %vm1785, %v1756, 0
        %1882 = vmatpush.msra.mxu0 %v1772
        %1883 = vmatpush.msra.mxu0 %v1771
        %1884 = vmatpush.msra.mxu0 %v1770
        %1885 = vmatpush.msra.mxu0 %v1769
        %1886 = vmatpush.msra.mxu0 %v1768
        %1887 = vmatpush.msra.mxu0 %v1767
        %1888 = vmatpush.msra.mxu0 %v1766
        %1889 = vmatpush.msra.mxu0 %v1765
        %1890 = vmatpush.msra.mxu0 %v1764
        %1891 = vmatpush.msra.mxu0 %v1763
        %1892 = vmatpush.msra.mxu0 %v1762
        %1893 = vmatpush.msra.mxu0 %v1761
        %1894 = vmatpush.msra.mxu0 %v1760
        %1895 = vmatpush.msra.mxu0 %v1759
        %1896 = vmatpush.msra.mxu0 %v1758
        %1897 = vmatpush.msra.mxu0 %v1757
        %1898 = vmatmul.f32.gmra.mxu0 %v1693
        %v1899 = vpop.f32.mrf.mxu0
        %v1900 = vadd.f32 %v1783, %v1899
        %1901 = vmatmul.f32.gmra.mxu0 %v1695
        %v1902 = vpop.f32.mrf.mxu0
        %v1903 = vadd.f32 %v1783, %v1902
        %1904 = vmatmul.f32.gmra.mxu0 %v1697
        %v1905 = vpop.f32.mrf.mxu0
        %v1906 = vadd.f32 %v1783, %v1905
        %1907 = vmatmul.f32.gmra.mxu0 %v1699
        %v1908 = vpop.f32.mrf.mxu0
        %v1909 = vadd.f32 %v1783, %v1908
        %1910 = vmatmul.f32.gmra.mxu0 %v1701
        %v1911 = vpop.f32.mrf.mxu0
        %v1912 = vadd.f32 %v1783, %v1911
        %1913 = vmatmul.f32.gmra.mxu0 %v1703
        %v1914 = vpop.f32.mrf.mxu0
        %v1915 = vadd.f32 %v1783, %v1914
        %1916 = vmatmul.f32.gmra.mxu0 %v1705
        %v1917 = vpop.f32.mrf.mxu0
        %v1918 = vadd.f32 %v1783, %v1917
        %1919 = vmatmul.f32.gmra.mxu0 %v1707
        %v1920 = vpop.f32.mrf.mxu0
        %v1921 = vadd.f32 %v1783, %v1920
        %1922 = vmatmul.f32.gmra.mxu0 %v1709
        %v1923 = vpop.f32.mrf.mxu0
        %v1924 = vadd.f32 %v1783, %v1923
        %1925 = vmatmul.f32.gmra.mxu0 %v1711
        %v1926 = vpop.f32.mrf.mxu0
        %v1927 = vadd.f32 %v1783, %v1926
        %1928 = vmatmul.f32.gmra.mxu0 %v1713
        %v1929 = vpop.f32.mrf.mxu0
        %v1930 = vadd.f32 %v1783, %v1929
        %1931 = vmatmul.f32.gmra.mxu0 %v1715
        %v1932 = vpop.f32.mrf.mxu0
        %v1933 = vadd.f32 %v1783, %v1932
        %1934 = vmatmul.f32.gmra.mxu0 %v1717
        %v1935 = vpop.f32.mrf.mxu0
        %v1936 = vadd.f32 %v1783, %v1935
        %1937 = vmatmul.f32.gmra.mxu0 %v1719
        %v1938 = vpop.f32.mrf.mxu0
        %v1939 = vadd.f32 %v1783, %v1938
        %1940 = vmatmul.f32.gmra.mxu0 %v1721
        %v1941 = vpop.f32.mrf.mxu0
        %v1942 = vadd.f32 %v1783, %v1941
        %1943 = vmatmul.f32.gmra.mxu0 %v1723
        %v1944 = vpop.f32.mrf.mxu0
        %v1945 = vadd.f32 %v1783, %v1944
        %1946 = vmatmul.f32.gmra.mxu0 %v1725
        %v1947 = vpop.f32.mrf.mxu0
        %v1948 = vadd.f32 %v1783, %v1947
        %1949 = vmatmul.f32.gmra.mxu0 %v1727
        %v1950 = vpop.f32.mrf.mxu0
        %v1951 = vadd.f32 %v1783, %v1950
        %1952 = vmatmul.f32.gmra.mxu0 %v1729
        %v1953 = vpop.f32.mrf.mxu0
        %v1954 = vadd.f32 %v1783, %v1953
        %1955 = vmatmul.f32.gmra.mxu0 %v1731
        %v1956 = vpop.f32.mrf.mxu0
        %v1957 = vadd.f32 %v1783, %v1956
        %1958 = vmatmul.f32.gmra.mxu0 %v1733
        %v1959 = vpop.f32.mrf.mxu0
        %v1960 = vadd.f32 %v1783, %v1959
        %1961 = vmatmul.f32.gmra.mxu0 %v1735
        %v1962 = vpop.f32.mrf.mxu0
        %v1963 = vadd.f32 %v1783, %v1962
        %1964 = vmatmul.f32.gmra.mxu0 %v1737
        %v1965 = vpop.f32.mrf.mxu0
        %v1966 = vadd.f32 %v1783, %v1965
        %1967 = vmatmul.f32.gmra.mxu0 %v1739
        %v1968 = vpop.f32.mrf.mxu0
        %v1969 = vadd.f32 %v1783, %v1968
        %1970 = vmatmul.f32.gmra.mxu0 %v1741
        %v1971 = vpop.f32.mrf.mxu0
        %v1972 = vadd.f32 %v1783, %v1971
        %1973 = vmatmul.f32.gmra.mxu0 %v1743
        %v1974 = vpop.f32.mrf.mxu0
        %v1975 = vadd.f32 %v1783, %v1974
        %1976 = vmatmul.f32.gmra.mxu0 %v1745
        %v1977 = vpop.f32.mrf.mxu0
        %v1978 = vadd.f32 %v1783, %v1977
        %1979 = vmatmul.f32.gmra.mxu0 %v1747
        %v1980 = vpop.f32.mrf.mxu0
        %v1981 = vadd.f32 %v1783, %v1980
        %1982 = vmatmul.f32.gmra.mxu0 %v1749
        %v1983 = vpop.f32.mrf.mxu0
        %v1984 = vadd.f32 %v1783, %v1983
        %1985 = vmatmul.f32.gmra.mxu0 %v1751
        %v1986 = vpop.f32.mrf.mxu0
        %v1987 = vadd.f32 %v1783, %v1986
        %1988 = vmatmul.f32.gmra.mxu0 %v1753
        %v1989 = vpop.f32.mrf.mxu0
        %v1990 = vadd.f32 %v1783, %v1989
        %1991 = vmatmul.f32.gmra.mxu0 %v1755
        %v1992 = vpop.f32.mrf.mxu0
        %v1993 = vadd.f32 %v1783, %v1992
        %1994 = vdwg.mxu0
        %1995 = vmatpush.msra.mxu0 0.0
        %1996 = vmatpush.msra.mxu0 0.0
        %1997 = vmatpush.msra.mxu0 0.0
        %1998 = vmatpush.msra.mxu0 0.0
        %1999 = vmatpush.msra.mxu0 0.0
        %2000 = vmatpush.msra.mxu0 0.0
        %2001 = vmatpush.msra.mxu0 0.0
        %2002 = vmatpush.msra.mxu0 0.0
        %2003 = vmatpush.msra.mxu0 %v1780
        %2004 = vmatpush.msra.mxu0 %v1779
        %2005 = vmatpush.msra.mxu0 %v1778
        %2006 = vmatpush.msra.mxu0 %v1777
        %2007 = vmatpush.msra.mxu0 %v1776
        %2008 = vmatpush.msra.mxu0 %v1775
        %2009 = vmatpush.msra.mxu0 %v1774
        %2010 = vmatpush.msra.mxu0 %v1773
        %2011 = vmatmul.f32.gmra.mxu0 %v1787
        %v2012 = vpop.f32.mrf.mxu0
        %v2013 = vadd.f32 %v1900, %v2012
        %2014 = vmatmul.f32.gmra.mxu0 %v1790
        %v2015 = vpop.f32.mrf.mxu0
        %v2016 = vadd.f32 %v1903, %v2015
        %2017 = vmatmul.f32.gmra.mxu0 %v1793
        %v2018 = vpop.f32.mrf.mxu0
        %v2019 = vadd.f32 %v1906, %v2018
        %2020 = vmatmul.f32.gmra.mxu0 %v1796
        %v2021 = vpop.f32.mrf.mxu0
        %v2022 = vadd.f32 %v1909, %v2021
        %2023 = vmatmul.f32.gmra.mxu0 %v1799
        %v2024 = vpop.f32.mrf.mxu0
        %v2025 = vadd.f32 %v1912, %v2024
        %2026 = vmatmul.f32.gmra.mxu0 %v1802
        %v2027 = vpop.f32.mrf.mxu0
        %v2028 = vadd.f32 %v1915, %v2027
        %2029 = vmatmul.f32.gmra.mxu0 %v1805
        %v2030 = vpop.f32.mrf.mxu0
        %v2031 = vadd.f32 %v1918, %v2030
        %2032 = vmatmul.f32.gmra.mxu0 %v1808
        %v2033 = vpop.f32.mrf.mxu0
        %v2034 = vadd.f32 %v1921, %v2033
        %2035 = vmatmul.f32.gmra.mxu0 %v1811
        %v2036 = vpop.f32.mrf.mxu0
        %v2037 = vadd.f32 %v1924, %v2036
        %2038 = vmatmul.f32.gmra.mxu0 %v1814
        %v2039 = vpop.f32.mrf.mxu0
        %v2040 = vadd.f32 %v1927, %v2039
        %2041 = vmatmul.f32.gmra.mxu0 %v1817
        %v2042 = vpop.f32.mrf.mxu0
        %v2043 = vadd.f32 %v1930, %v2042
        %2044 = vmatmul.f32.gmra.mxu0 %v1820
        %v2045 = vpop.f32.mrf.mxu0
        %v2046 = vadd.f32 %v1933, %v2045
        %2047 = vmatmul.f32.gmra.mxu0 %v1823
        %v2048 = vpop.f32.mrf.mxu0
        %v2049 = vadd.f32 %v1936, %v2048
        %2050 = vmatmul.f32.gmra.mxu0 %v1826
        %v2051 = vpop.f32.mrf.mxu0
        %v2052 = vadd.f32 %v1939, %v2051
        %2053 = vmatmul.f32.gmra.mxu0 %v1829
        %v2054 = vpop.f32.mrf.mxu0
        %v2055 = vadd.f32 %v1942, %v2054
        %2056 = vmatmul.f32.gmra.mxu0 %v1832
        %v2057 = vpop.f32.mrf.mxu0
        %v2058 = vadd.f32 %v1945, %v2057
        %2059 = vmatmul.f32.gmra.mxu0 %v1835
        %v2060 = vpop.f32.mrf.mxu0
        %v2061 = vadd.f32 %v1948, %v2060
        %2062 = vmatmul.f32.gmra.mxu0 %v1838
        %v2063 = vpop.f32.mrf.mxu0
        %v2064 = vadd.f32 %v1951, %v2063
        %2065 = vmatmul.f32.gmra.mxu0 %v1841
        %v2066 = vpop.f32.mrf.mxu0
        %v2067 = vadd.f32 %v1954, %v2066
        %2068 = vmatmul.f32.gmra.mxu0 %v1844
        %v2069 = vpop.f32.mrf.mxu0
        %v2070 = vadd.f32 %v1957, %v2069
        %2071 = vmatmul.f32.gmra.mxu0 %v1847
        %v2072 = vpop.f32.mrf.mxu0
        %v2073 = vadd.f32 %v1960, %v2072
        %2074 = vmatmul.f32.gmra.mxu0 %v1850
        %v2075 = vpop.f32.mrf.mxu0
        %v2076 = vadd.f32 %v1963, %v2075
        %2077 = vmatmul.f32.gmra.mxu0 %v1853
        %v2078 = vpop.f32.mrf.mxu0
        %v2079 = vadd.f32 %v1966, %v2078
        %2080 = vmatmul.f32.gmra.mxu0 %v1856
        %v2081 = vpop.f32.mrf.mxu0
        %v2082 = vadd.f32 %v1969, %v2081
        %2083 = vmatmul.f32.gmra.mxu0 %v1859
        %v2084 = vpop.f32.mrf.mxu0
        %v2085 = vadd.f32 %v1972, %v2084
        %2086 = vmatmul.f32.gmra.mxu0 %v1862
        %v2087 = vpop.f32.mrf.mxu0
        %v2088 = vadd.f32 %v1975, %v2087
        %2089 = vmatmul.f32.gmra.mxu0 %v1865
        %v2090 = vpop.f32.mrf.mxu0
        %v2091 = vadd.f32 %v1978, %v2090
        %2092 = vmatmul.f32.gmra.mxu0 %v1868
        %v2093 = vpop.f32.mrf.mxu0
        %v2094 = vadd.f32 %v1981, %v2093
        %2095 = vmatmul.f32.gmra.mxu0 %v1871
        %v2096 = vpop.f32.mrf.mxu0
        %v2097 = vadd.f32 %v1984, %v2096
        %2098 = vmatmul.f32.gmra.mxu0 %v1874
        %v2099 = vpop.f32.mrf.mxu0
        %v2100 = vadd.f32 %v1987, %v2099
        %2101 = vmatmul.f32.gmra.mxu0 %v1877
        %v2102 = vpop.f32.mrf.mxu0
        %v2103 = vadd.f32 %v1990, %v2102
        %2104 = vmatmul.f32.gmra.mxu0 %v1880
        %v2105 = vpop.f32.mrf.mxu0
        %v2106 = vadd.f32 %v1993, %v2105
        %2107 = vdwg.mxu0
        %v2108 = vmax.f32 %v2013, 0.0
        %v2109 = vmax.f32 %v2016, 0.0
        %v2110 = vmax.f32 %v2019, 0.0
        %v2111 = vmax.f32 %v2022, 0.0
        %v2112 = vmax.f32 %v2025, 0.0
        %v2113 = vmax.f32 %v2028, 0.0
        %v2114 = vmax.f32 %v2031, 0.0
        %v2115 = vmax.f32 %v2034, 0.0
        %v2116 = vmax.f32 %v2037, 0.0
        %v2117 = vmax.f32 %v2040, 0.0
        %v2118 = vmax.f32 %v2043, 0.0
        %v2119 = vmax.f32 %v2046, 0.0
        %v2120 = vmax.f32 %v2049, 0.0
        %v2121 = vmax.f32 %v2052, 0.0
        %v2122 = vmax.f32 %v2055, 0.0
        %v2123 = vmax.f32 %v2058, 0.0
        %v2124 = vmax.f32 %v2061, 0.0
        %v2125 = vmax.f32 %v2064, 0.0
        %v2126 = vmax.f32 %v2067, 0.0
        %v2127 = vmax.f32 %v2070, 0.0
        %v2128 = vmax.f32 %v2073, 0.0
        %v2129 = vmax.f32 %v2076, 0.0
        %v2130 = vmax.f32 %v2079, 0.0
        %v2131 = vmax.f32 %v2082, 0.0
        %v2132 = vmax.f32 %v2085, 0.0
        %v2133 = vmax.f32 %v2088, 0.0
        %v2134 = vmax.f32 %v2091, 0.0
        %v2135 = vmax.f32 %v2094, 0.0
        %v2136 = vmax.f32 %v2097, 0.0
        %v2137 = vmax.f32 %v2100, 0.0
        %v2138 = vmax.f32 %v2103, 0.0
        %v2139 = vmax.f32 %v2106, 0.0
        %v2140 = vld [vmem:[%s2] sm:$0xff]
        %v2141 = vld [vmem:[%s2 + $0x8] sm:$0xff]
        %v2142 = vld [vmem:[%s2 + $0x10] sm:$0xff]
        %v2143 = vld [vmem:[%s2 + $0x18] sm:$0xff]
        %v2144 = vld [vmem:[%s2 + $0x20] sm:$0xff]
        %v2145 = vld [vmem:[%s2 + $0x28] sm:$0xff]
        %v2146 = vld [vmem:[%s2 + $0x30] sm:$0xff]
        %v2147 = vld [vmem:[%s2 + $0x38] sm:$0xff]
        %v2148 = vld [vmem:[%s2 + $0x40] sm:$0xff]
        %v2149 = vld [vmem:[%s2 + $0x48] sm:$0xff]
        %v2150 = vld [vmem:[%s2 + $0x50] sm:$0xff]
        %v2151 = vld [vmem:[%s2 + $0x58] sm:$0xff]
        %v2152 = vld [vmem:[%s2 + $0x60] sm:$0xff]
        %v2153 = vld [vmem:[%s2 + $0x68] sm:$0xff]
        %v2154 = vld [vmem:[%s2 + $0x70] sm:$0xff]
        %v2155 = vld [vmem:[%s2 + $0x78] sm:$0xff]
        %v2156 = vld [vmem:[%s4] sm:$0x1]
        %v2158 = vperm.slane %v2156, 0
        %2160 = vmatpush.msra.mxu0 %v2155
        %2161 = vmatpush.msra.mxu0 %v2154
        %2162 = vmatpush.msra.mxu0 %v2153
        %2163 = vmatpush.msra.mxu0 %v2152
        %2164 = vmatpush.msra.mxu0 %v2151
        %2165 = vmatpush.msra.mxu0 %v2150
        %2166 = vmatpush.msra.mxu0 %v2149
        %2167 = vmatpush.msra.mxu0 %v2148
        %2168 = vmatpush.msra.mxu0 %v2147
        %2169 = vmatpush.msra.mxu0 %v2146
        %2170 = vmatpush.msra.mxu0 %v2145
        %2171 = vmatpush.msra.mxu0 %v2144
        %2172 = vmatpush.msra.mxu0 %v2143
        %2173 = vmatpush.msra.mxu0 %v2142
        %2174 = vmatpush.msra.mxu0 %v2141
        %2175 = vmatpush.msra.mxu0 %v2140
        %2176 = vmatmul.f32.gmra.mxu0 %v2108
        %v2177 = vpop.f32.mrf.mxu0
        %v2178 = vadd.f32 %v2158, %v2177
        %2179 = vmatmul.f32.gmra.mxu0 %v2109
        %v2180 = vpop.f32.mrf.mxu0
        %v2181 = vadd.f32 %v2158, %v2180
        %2182 = vmatmul.f32.gmra.mxu0 %v2110
        %v2183 = vpop.f32.mrf.mxu0
        %v2184 = vadd.f32 %v2158, %v2183
        %2185 = vmatmul.f32.gmra.mxu0 %v2111
        %v2186 = vpop.f32.mrf.mxu0
        %v2187 = vadd.f32 %v2158, %v2186
        %2188 = vmatmul.f32.gmra.mxu0 %v2112
        %v2189 = vpop.f32.mrf.mxu0
        %v2190 = vadd.f32 %v2158, %v2189
        %2191 = vmatmul.f32.gmra.mxu0 %v2113
        %v2192 = vpop.f32.mrf.mxu0
        %v2193 = vadd.f32 %v2158, %v2192
        %2194 = vmatmul.f32.gmra.mxu0 %v2114
        %v2195 = vpop.f32.mrf.mxu0
        %v2196 = vadd.f32 %v2158, %v2195
        %2197 = vmatmul.f32.gmra.mxu0 %v2115
        %v2198 = vpop.f32.mrf.mxu0
        %v2199 = vadd.f32 %v2158, %v2198
        %2200 = vmatmul.f32.gmra.mxu0 %v2116
        %v2201 = vpop.f32.mrf.mxu0
        %v2202 = vadd.f32 %v2158, %v2201
        %2203 = vmatmul.f32.gmra.mxu0 %v2117
        %v2204 = vpop.f32.mrf.mxu0
        %v2205 = vadd.f32 %v2158, %v2204
        %2206 = vmatmul.f32.gmra.mxu0 %v2118
        %v2207 = vpop.f32.mrf.mxu0
        %v2208 = vadd.f32 %v2158, %v2207
        %2209 = vmatmul.f32.gmra.mxu0 %v2119
        %v2210 = vpop.f32.mrf.mxu0
        %v2211 = vadd.f32 %v2158, %v2210
        %2212 = vmatmul.f32.gmra.mxu0 %v2120
        %v2213 = vpop.f32.mrf.mxu0
        %v2214 = vadd.f32 %v2158, %v2213
        %2215 = vmatmul.f32.gmra.mxu0 %v2121
        %v2216 = vpop.f32.mrf.mxu0
        %v2217 = vadd.f32 %v2158, %v2216
        %2218 = vmatmul.f32.gmra.mxu0 %v2122
        %v2219 = vpop.f32.mrf.mxu0
        %v2220 = vadd.f32 %v2158, %v2219
        %2221 = vmatmul.f32.gmra.mxu0 %v2123
        %v2222 = vpop.f32.mrf.mxu0
        %v2223 = vadd.f32 %v2158, %v2222
        %2224 = vmatmul.f32.gmra.mxu0 %v2124
        %v2225 = vpop.f32.mrf.mxu0
        %v2226 = vadd.f32 %v2158, %v2225
        %2227 = vmatmul.f32.gmra.mxu0 %v2125
        %v2228 = vpop.f32.mrf.mxu0
        %v2229 = vadd.f32 %v2158, %v2228
        %2230 = vmatmul.f32.gmra.mxu0 %v2126
        %v2231 = vpop.f32.mrf.mxu0
        %v2232 = vadd.f32 %v2158, %v2231
        %2233 = vmatmul.f32.gmra.mxu0 %v2127
        %v2234 = vpop.f32.mrf.mxu0
        %v2235 = vadd.f32 %v2158, %v2234
        %2236 = vmatmul.f32.gmra.mxu0 %v2128
        %v2237 = vpop.f32.mrf.mxu0
        %v2238 = vadd.f32 %v2158, %v2237
        %2239 = vmatmul.f32.gmra.mxu0 %v2129
        %v2240 = vpop.f32.mrf.mxu0
        %v2241 = vadd.f32 %v2158, %v2240
        %2242 = vmatmul.f32.gmra.mxu0 %v2130
        %v2243 = vpop.f32.mrf.mxu0
        %v2244 = vadd.f32 %v2158, %v2243
        %2245 = vmatmul.f32.gmra.mxu0 %v2131
        %v2246 = vpop.f32.mrf.mxu0
        %v2247 = vadd.f32 %v2158, %v2246
        %2248 = vmatmul.f32.gmra.mxu0 %v2132
        %v2249 = vpop.f32.mrf.mxu0
        %v2250 = vadd.f32 %v2158, %v2249
        %2251 = vmatmul.f32.gmra.mxu0 %v2133
        %v2252 = vpop.f32.mrf.mxu0
        %v2253 = vadd.f32 %v2158, %v2252
        %2254 = vmatmul.f32.gmra.mxu0 %v2134
        %v2255 = vpop.f32.mrf.mxu0
        %v2256 = vadd.f32 %v2158, %v2255
        %2257 = vmatmul.f32.gmra.mxu0 %v2135
        %v2258 = vpop.f32.mrf.mxu0
        %v2259 = vadd.f32 %v2158, %v2258
        %2260 = vmatmul.f32.gmra.mxu0 %v2136
        %v2261 = vpop.f32.mrf.mxu0
        %v2262 = vadd.f32 %v2158, %v2261
        %2263 = vmatmul.f32.gmra.mxu0 %v2137
        %v2264 = vpop.f32.mrf.mxu0
        %v2265 = vadd.f32 %v2158, %v2264
        %2266 = vmatmul.f32.gmra.mxu0 %v2138
        %v2267 = vpop.f32.mrf.mxu0
        %v2268 = vadd.f32 %v2158, %v2267
        %2269 = vmatmul.f32.gmra.mxu0 %v2139
        %v2270 = vpop.f32.mrf.mxu0
        %v2271 = vadd.f32 %v2158, %v2270
        %2272 = vdwg.mxu0
        %v2273 = vmax.f32 %v2178, 0.0
        %v2274 = vmax.f32 %v2181, 0.0
        %v2275 = vmax.f32 %v2184, 0.0
        %v2276 = vmax.f32 %v2187, 0.0
        %v2277 = vmax.f32 %v2190, 0.0
        %v2278 = vmax.f32 %v2193, 0.0
        %v2279 = vmax.f32 %v2196, 0.0
        %v2280 = vmax.f32 %v2199, 0.0
        %v2281 = vmax.f32 %v2202, 0.0
        %v2282 = vmax.f32 %v2205, 0.0
        %v2283 = vmax.f32 %v2208, 0.0
        %v2284 = vmax.f32 %v2211, 0.0
        %v2285 = vmax.f32 %v2214, 0.0
        %v2286 = vmax.f32 %v2217, 0.0
        %v2287 = vmax.f32 %v2220, 0.0
        %v2288 = vmax.f32 %v2223, 0.0
        %v2289 = vmax.f32 %v2226, 0.0
        %v2290 = vmax.f32 %v2229, 0.0
        %v2291 = vmax.f32 %v2232, 0.0
        %v2292 = vmax.f32 %v2235, 0.0
        %v2293 = vmax.f32 %v2238, 0.0
        %v2294 = vmax.f32 %v2241, 0.0
        %v2295 = vmax.f32 %v2244, 0.0
        %v2296 = vmax.f32 %v2247, 0.0
        %v2297 = vmax.f32 %v2250, 0.0
        %v2298 = vmax.f32 %v2253, 0.0
        %v2299 = vmax.f32 %v2256, 0.0
        %v2300 = vmax.f32 %v2259, 0.0
        %v2301 = vmax.f32 %v2262, 0.0
        %v2302 = vmax.f32 %v2265, 0.0
        %v2303 = vmax.f32 %v2268, 0.0
        %v2304 = vmax.f32 %v2271, 0.0
        %v2305 = vld [vmem:[%s5] sm:$0x1]
        %v2306 = vld [vmem:[#allocation2] sm:$0x1]
        %2308 = vset.pattern.permute.xlu0 0
        %2309 = vperm.xlu0 %2308, %v2306
        %v2310 = vpop.permute.xlu0 %2309
        %v2312 = vperm.slane %v2310, 0
        %2313 = vmatpush.xpose.msra.mxu0 %v2288
        %2314 = vmatpush.xpose.msra.mxu0 %v2287
        %2315 = vmatpush.xpose.msra.mxu0 %v2286
        %2316 = vmatpush.xpose.msra.mxu0 %v2285
        %2317 = vmatpush.xpose.msra.mxu0 %v2284
        %2318 = vmatpush.xpose.msra.mxu0 %v2283
        %2319 = vmatpush.xpose.msra.mxu0 %v2282
        %2320 = vmatpush.xpose.msra.mxu0 %v2281
        %2321 = vmatpush.xpose.msra.mxu0 %v2280
        %2322 = vmatpush.xpose.msra.mxu0 %v2279
        %2323 = vmatpush.xpose.msra.mxu0 %v2278
        %2324 = vmatpush.xpose.msra.mxu0 %v2277
        %2325 = vmatpush.xpose.msra.mxu0 %v2276
        %2326 = vmatpush.xpose.msra.mxu0 %v2275
        %2327 = vmatpush.xpose.msra.mxu0 %v2274
        %2328 = vmatpush.xpose.msra.mxu0 %v2273
        %2329 = vmatmul.f32.gmra.mxu0 %v2305
        %v2330 = vpop.f32.mrf.mxu0
        %v2331 = vadd.f32 %v2312, %v2330
        %2332 = vdwg.mxu0
        %2333 = vmatpush.xpose.msra.mxu0 %v2304
        %2334 = vmatpush.xpose.msra.mxu0 %v2303
        %2335 = vmatpush.xpose.msra.mxu0 %v2302
        %2336 = vmatpush.xpose.msra.mxu0 %v2301
        %2337 = vmatpush.xpose.msra.mxu0 %v2300
        %2338 = vmatpush.xpose.msra.mxu0 %v2299
        %2339 = vmatpush.xpose.msra.mxu0 %v2298
        %2340 = vmatpush.xpose.msra.mxu0 %v2297
        %2341 = vmatpush.xpose.msra.mxu0 %v2296
        %2342 = vmatpush.xpose.msra.mxu0 %v2295
        %2343 = vmatpush.xpose.msra.mxu0 %v2294
        %2344 = vmatpush.xpose.msra.mxu0 %v2293
        %2345 = vmatpush.xpose.msra.mxu0 %v2292
        %2346 = vmatpush.xpose.msra.mxu0 %v2291
        %2347 = vmatpush.xpose.msra.mxu0 %v2290
        %2348 = vmatpush.xpose.msra.mxu0 %v2289
        %2349 = vmatmul.f32.gmra.mxu0 %v2305
        %v2350 = vpop.f32.mrf.mxu0
        %v2351 = vadd.f32 %v2312, %v2350
        %2352 = vdwg.mxu0
        %v2353 = vxor.u32 %v2331, 2147483648
        %v2354 = vxor.u32 %v2351, 2147483648
        %v2355 = vmul.f32 %v2353, 1.442695
        %v2356 = vpow.pop %v2355
        %v2357 = vmul.f32 %v2354, 1.442695
        %v2358 = vpow.pop %v2357
        %v2359 = vadd.f32 %v2356, 1.0
        %v2360 = vadd.f32 %v2358, 1.0
        %v2361 = vrcp.pop %v2359
        %v2362 = vmul.f32 %v2359, %v2361
        %v2363 = vsub.f32 1.0, %v2362
        %v2364 = vmul.f32 %v2361, %v2363
        %v2365 = vadd.f32 %v2361, %v2364
        %vm2366 = vweird.f32 %v2359
        %vm2367 = vweird.f32 %v2361
        %vm2368 = vmor %vm2366, %vm2367
        %v2369 = vsel %vm2368, %v2361, %v2365
        %v2370 = vand.u32 2147483647, %v2359
        %vm2371 = vcmp.eq.f32.partialorder %v2370, 8.507059e+37
        %v2372 = vand.u32 %v2359, 2147483648
        %v2373 = vor.u32 1.1754944e-38, %v2372
        %v2374 = vsel %vm2371, %v2373, %v2369
        %v2375 = vmul.f32 1.0, %v2374
        %v2376 = vrcp.pop %v2360
        %v2377 = vmul.f32 %v2360, %v2376
        %v2378 = vsub.f32 1.0, %v2377
        %v2379 = vmul.f32 %v2376, %v2378
        %v2380 = vadd.f32 %v2376, %v2379
        %vm2381 = vweird.f32 %v2360
        %vm2382 = vweird.f32 %v2376
        %vm2383 = vmor %vm2381, %vm2382
        %v2384 = vsel %vm2383, %v2376, %v2380
        %v2385 = vand.u32 2147483647, %v2360
        %vm2386 = vcmp.eq.f32.partialorder %v2385, 8.507059e+37
        %v2387 = vand.u32 %v2360, 2147483648
        %v2388 = vor.u32 1.1754944e-38, %v2387
        %v2389 = vsel %vm2386, %v2388, %v2384
        %v2390 = vmul.f32 1.0, %v2389
        %v2393 = vrot.slane %v2390, 7
        %vm2394 = vcmask 1040384
        %v2395 = vsel %vm2394, %v2375, %v2393
        %v2397 = vlaneseq
        %vm2398 = vcmp.ge.s32.totalorder %v2397, 0
        %vm2399 = vcmp.lt.s32.totalorder %v2397, 256
        %vm2400 = vmand %vm2398, %vm2399
        %2401 = vst.msk [vmem:[%s274] sm:$0x3] %vm2400, %v2395
        %s2402 = sand.u32 %s183, 1
        %s2403 = scalar_lea.sflag [#allocation4], %s2402
        %s2404 = sand.u32 %s183, 1
        %s2405 = smul.addr %s2404, 2
        %s2406 = scalar_lea.vmem [#allocation3], %s2405
        // Predicated region
        $region49: #{tpu_custom_call.1} parent=47 // pred_check
          %p2407 = pneg %p193
        $region50: #{tpu_custom_call.1} parent=47 // pred_check_branch
          %2409 = sbr.rel (%p2407) target = $region52
        $region51: #{tpu_custom_call.1} parent=47 // pred_region
          %s2410 = smul.u32 2, %s23
          %2412 = vsyncadd %s2403, 0
          %s2413 = scalar_lea.hbm %s7, %s2410
          %s2415 = sshll.u32 %s2406, 4
          %s2416 = int_to_ptr.vmem [resolvable:$true] %s2415
          %s2417 = sshll.u32 %s2413, 4
          %s2418 = int_to_ptr.hbm [resolvable:$true] %s2417
          %2420 = dma.vmem_to_hbm [thread:$0]  %s2416, 32, %s2418, %s2403
        $region52: #{tpu_custom_call.1} parent=47 // pred_fallthru
          _
      $region48: #{tpu_custom_call.1} parent=5 // pred_fallthru
        _
      %p2421 = scmp.le.s32.totalorder 2, %s18
      // Predicated region
      $region53: #{tpu_custom_call.1} parent=5 // pred_check
        %p2422 = pneg %p2421
      $region54: #{tpu_custom_call.1} parent=5 // pred_check_branch
        %2424 = sbr.rel (%p2422) target = $region56
      $region55: #{tpu_custom_call.1} parent=5 // pred_region
        %s2425 = ssub.s32 %s18, 2
        // Predicated region
        $region57: #{tpu_custom_call.1} parent=55 // pred_check
          %p2426 = pneg %p199
        $region58: #{tpu_custom_call.1} parent=55 // pred_check_branch
          %2428 = sbr.rel (%p2426) target = $region60
        $region59: #{tpu_custom_call.1} parent=55 // pred_region
          %s2429 = sand.u32 %s184, 1
          %s2430 = scalar_lea.sflag [#allocation4], %s2429
          %s2431 = sand.u32 %s184, 1
          %s2432 = smul.addr %s2431, 2
          %s2433 = scalar_lea.vmem [#allocation3], %s2432
          %2435 = dma.done %s2430, 32
        $region60: #{tpu_custom_call.1} parent=55 // pred_fallthru
          _
      $region56: #{tpu_custom_call.1} parent=5 // pred_fallthru
        _
    $region6: #{tpu_custom_call.1} parent=1 // loop_footer
      %s22 = sadd.s32 1, %s18
    $region7: #{tpu_custom_call.1} parent=1 // loop_footer_branch
      %17 = sbr.rel target = $region3
    $region8: #{tpu_custom_call.1} parent=1 // loop_exit
      _
    %2436 = vsyncpa [#allocation4], 1
    %s2437 = scalar_lea.sflag [#allocation4], 1
    %2438 = vsyncpa %s2437, 1

</llo_original>
